<compile_context>
chip_gen: v5e
topology: v5e:2x2
jax: 0.10.0
libtpu: 0.0.40
codegen_flags: <defaults>
</compile_context>

<pallas_src>
import functools
import math

import jax
import jax.numpy as jnp
from jax.experimental import pallas as pl
from jax.experimental.pallas import tpu as pltpu


# ----------------------------------------------------------------------------
# helpers
# ----------------------------------------------------------------------------
def _round_up(x, m):
    return ((x + m - 1) // m) * m


def _pad2d(a, rows, cols):
    if a.shape == (rows, cols):
        return a
    return jnp.zeros((rows, cols), a.dtype).at[: a.shape[0], : a.shape[1]].set(a)


def _pad3d(a, rows, cols):
    n, r, c = a.shape
    if (r, c) == (rows, cols):
        return a
    return jnp.zeros((n, rows, cols), a.dtype).at[:, :r, :c].set(a)


# ----------------------------------------------------------------------------
# Kernel 1: fused position-wise Feed_Forward  y = relu(x@W1+b1)@W2+b2
# ----------------------------------------------------------------------------
def ffn_kernel(x_ref, w1_ref, b1_ref, w2_ref, b2_ref, o_ref, acc_ref):
    k = pl.program_id(1)

    @pl.when(k == 0)
    def _():
        acc_ref[...] = jnp.zeros_like(acc_ref)

    # First linear for this hidden-dim slice + bias + ReLU (MXU + VPU).
    h = jnp.dot(x_ref[...], w1_ref[...], preferred_element_type=jnp.float32)
    h = jnp.maximum(h + b1_ref[...], 0.0)

    # Second linear: accumulate this hidden-slice's partial product.
    acc_ref[...] += jnp.dot(h.astype(w2_ref.dtype), w2_ref[...],
                            preferred_element_type=jnp.float32)

    @pl.when(k == pl.num_programs(1) - 1)
    def _():
        o_ref[...] = (acc_ref[...] + b2_ref[...]).astype(o_ref.dtype)


def feed_forward(x, w1, b1, w2, b2, *, tm=256, tk=512):
    """x: (batch, seq, d_in); w1: (d_in, d_h); b1: (d_h,); w2: (d_h, d_in); b2: (d_in,)."""
    batch, seq, d_in = x.shape
    d_h = w1.shape[1]
    M = batch * seq

    d_in_p = _round_up(d_in, 128)
    d_h_p = _round_up(d_h, 128)
    tm = min(tm, _round_up(M, 8))
    tk = min(tk, d_h_p)
    M_p = _round_up(M, tm)
    d_h_p = _round_up(d_h_p, tk)

    # Zero-padding is semantics-preserving (padded x cols hit zero W1 rows, etc.)
    x2d = _pad2d(x.reshape(M, d_in), M_p, d_in_p)
    w1_p = _pad2d(w1, d_in_p, d_h_p)
    b1_p = _pad2d(b1.reshape(1, d_h), 1, d_h_p)
    w2_p = _pad2d(w2, d_h_p, d_in_p)
    b2_p = _pad2d(b2.reshape(1, d_in), 1, d_in_p)

    grid = (M_p // tm, d_h_p // tk)  # rows parallel, hidden-dim reduction last

    itemsize = jnp.dtype(x.dtype).itemsize
    vmem_bytes = (2 * itemsize * (tm * d_in_p + d_in_p * tk + tk
                                  + tk * d_in_p + d_in_p + tm * d_in_p)
                  + 4 * tm * (d_in_p + tk))
    vmem_limit = int(min(max(2 * vmem_bytes, 32 * 1024 * 1024),
                         100 * 1024 * 1024))

    cost = pl.CostEstimate(
        flops=4 * M_p * d_in_p * d_h_p,
        transcendentals=0,
        bytes_accessed=itemsize * (2 * M_p * d_in_p + 2 * d_in_p * d_h_p
                                   + d_h_p + d_in_p),
    )

    out2d = pl.pallas_call(
        ffn_kernel,
        out_shape=jax.ShapeDtypeStruct((M_p, d_in_p), x.dtype),
        grid_spec=pltpu.PrefetchScalarGridSpec(
            num_scalar_prefetch=0,
            grid=grid,
            in_specs=[
                pl.BlockSpec((tm, d_in_p), lambda i, k: (i, 0)),   # x row tile
                pl.BlockSpec((d_in_p, tk), lambda i, k: (0, k)),   # W1 hidden slice
                pl.BlockSpec((1, tk), lambda i, k: (0, k)),        # b1 hidden slice
                pl.BlockSpec((tk, d_in_p), lambda i, k: (k, 0)),   # W2 hidden slice
                pl.BlockSpec((1, d_in_p), lambda i, k: (0, 0)),    # b2
            ],
            out_specs=pl.BlockSpec((tm, d_in_p), lambda i, k: (i, 0)),
            scratch_shapes=[pltpu.VMEM((tm, d_in_p), jnp.float32)],
        ),
        compiler_params=pltpu.CompilerParams(
            dimension_semantics=("parallel", "arbitrary"),
            vmem_limit_bytes=vmem_limit),
        cost_estimate=cost,
    )(x2d, w1_p, b1_p, w2_p, b2_p)

    return out2d[:M, :d_in].reshape(batch, seq, d_in)


# ----------------------------------------------------------------------------
# Kernel 2: generic linear  y = x @ W + b  (used for q/k/v/o projections)
# ----------------------------------------------------------------------------
def linear_kernel(x_ref, w_ref, b_ref, o_ref, acc_ref):
    k = pl.program_id(1)

    @pl.when(k == 0)
    def _():
        acc_ref[...] = jnp.zeros_like(acc_ref)

    acc_ref[...] += jnp.dot(x_ref[...], w_ref[...],
                            preferred_element_type=jnp.float32)

    @pl.when(k == pl.num_programs(1) - 1)
    def _():
        o_ref[...] = (acc_ref[...] + b_ref[...]).astype(o_ref.dtype)


def linear(x2d, w, b, *, tm=256, tk=512):
    """x2d: (M, K); w: (K, N); b: (N,)  ->  (M, N)."""
    M, K = x2d.shape
    N = w.shape[1]

    K_p = _round_up(K, 128)
    N_p = _round_up(N, 128)
    tm = min(tm, _round_up(M, 8))
    tk = min(tk, K_p)
    M_p = _round_up(M, tm)
    K_p = _round_up(K_p, tk)

    x_p = _pad2d(x2d, M_p, K_p)
    w_p = _pad2d(w, K_p, N_p)
    b_p = _pad2d(b.reshape(1, N), 1, N_p)

    grid = (M_p // tm, K_p // tk)

    out = pl.pallas_call(
        linear_kernel,
        out_shape=jax.ShapeDtypeStruct((M_p, N_p), x2d.dtype),
        grid_spec=pltpu.PrefetchScalarGridSpec(
            num_scalar_prefetch=0,
            grid=grid,
            in_specs=[
                pl.BlockSpec((tm, tk), lambda i, k: (i, k)),
                pl.BlockSpec((tk, N_p), lambda i, k: (k, 0)),
                pl.BlockSpec((1, N_p), lambda i, k: (0, 0)),
            ],
            out_specs=pl.BlockSpec((tm, N_p), lambda i, k: (i, 0)),
            scratch_shapes=[pltpu.VMEM((tm, N_p), jnp.float32)],
        ),
        compiler_params=pltpu.CompilerParams(
            dimension_semantics=("parallel", "arbitrary")),
    )(x_p, w_p, b_p)

    return out[:M, :N]


# ----------------------------------------------------------------------------
# Kernel 3: attention core (per head*batch):  ctx = (Q @ K^T * scale) @ V
# (faithful to the original: no softmax, mask is a no-op)
# ----------------------------------------------------------------------------
def attn_core_kernel(scale, q_ref, k_ref, v_ref, o_ref):
    q = q_ref[0]          # (S_p, dk_p)
    k = k_ref[0]          # (S_p, dk_p)
    v = v_ref[0]          # (S_p, dv_p)
    s = jax.lax.dot_general(q, k, (((1,), (1,)), ((), ())),
                            preferred_element_type=jnp.float32) * scale
    o_ref[0] = jnp.dot(s.astype(v.dtype), v,
                       preferred_element_type=jnp.float32).astype(o_ref.dtype)


def attn_core(q, k, v, scale):
    """q,k: (HB, S, dk); v: (HB, S, dv) -> (HB, S, dv)."""
    HB, S, dk = q.shape
    dv = v.shape[-1]
    S_p = _round_up(S, 8)
    dk_p = _round_up(dk, 128)
    dv_p = _round_up(dv, 128)

    q_p = _pad3d(q, S_p, dk_p)
    k_p = _pad3d(k, S_p, dk_p)
    v_p = _pad3d(v, S_p, dv_p)

    out = pl.pallas_call(
        functools.partial(attn_core_kernel, scale),
        out_shape=jax.ShapeDtypeStruct((HB, S_p, dv_p), q.dtype),
        grid_spec=pltpu.PrefetchScalarGridSpec(
            num_scalar_prefetch=0,
            grid=(HB,),
            in_specs=[
                pl.BlockSpec((1, S_p, dk_p), lambda i: (i, 0, 0)),
                pl.BlockSpec((1, S_p, dk_p), lambda i: (i, 0, 0)),
                pl.BlockSpec((1, S_p, dv_p), lambda i: (i, 0, 0)),
            ],
            out_specs=pl.BlockSpec((1, S_p, dv_p), lambda i: (i, 0, 0)),
        ),
        compiler_params=pltpu.CompilerParams(
            dimension_semantics=("parallel",)),
    )(q_p, k_p, v_p)

    return out[:, :S, :dv]


# ----------------------------------------------------------------------------
# Kernel 4: Add_Norm  ->  LayerNorm_(S,D)(x + sub),  gamma=1, beta=0, eps=1e-5
# (dropout is eval-mode identity)
# TODO(synk): train-mode nn.Dropout randomness is not reproduced (eval identity).
# ----------------------------------------------------------------------------
def add_layer_norm_kernel(x_ref, y_ref, o_ref):
    v = x_ref[0].astype(jnp.float32) + y_ref[0].astype(jnp.float32)   # (S, D)
    mean = jnp.mean(v, keepdims=True)
    c = v - mean
    var = jnp.mean(c * c, keepdims=True)
    o_ref[0] = (c * jax.lax.rsqrt(var + 1e-5)).astype(o_ref.dtype)


def add_layer_norm(x, sub):
    B, S, D = x.shape
    return pl.pallas_call(
        add_layer_norm_kernel,
        out_shape=jax.ShapeDtypeStruct((B, S, D), x.dtype),
        grid_spec=pltpu.PrefetchScalarGridSpec(
            num_scalar_prefetch=0,
            grid=(B,),
            in_specs=[
                pl.BlockSpec((1, S, D), lambda b: (b, 0, 0)),
                pl.BlockSpec((1, S, D), lambda b: (b, 0, 0)),
            ],
            out_specs=pl.BlockSpec((1, S, D), lambda b: (b, 0, 0)),
        ),
        compiler_params=pltpu.CompilerParams(
            dimension_semantics=("parallel",)),
    )(x, sub)


# ----------------------------------------------------------------------------
# Multihead attention wrapper (torch-faithful reshapes, Pallas matmuls)
# ----------------------------------------------------------------------------
def multihead_attention(x, y, p, n_heads, d_model):
    B, S, D = x.shape
    By, Sy, _ = y.shape
    dim_k = p["wq"].shape[1]
    dim_v = p["wv"].shape[1]
    dk = dim_k // n_heads
    dv = dim_v // n_heads

    # Fused Q/K projection (x is read once), separate V projection on y.
    w_qk = jnp.concatenate([p["wq"], p["wk"]], axis=1)
    b_qk = jnp.concatenate([p["bq"], p["bk"]], axis=0)
    qk = linear(x.reshape(B * S, D), w_qk, b_qk)            # (B*S, 2*dim_k)
    v_proj = linear(y.reshape(By * Sy, D), p["wv"], p["bv"])  # (By*Sy, dim_k)

    q_proj = qk[:, :dim_k]
    k_proj = qk[:, dim_k:]

    # torch-style flat reshape to (heads, B, S, dk) == (heads*B, S, dk) row-major.
    HB = n_heads * B
    Q = q_proj.reshape(HB, S, dk)
    K = k_proj.reshape(HB, S, dk)
    V = v_proj.reshape(HB, S, dv)    # uses x's (B, S) per the original code

    scale = 1.0 / math.sqrt(d_model)
    ctx = attn_core(Q, K, V, scale)                          # (HB, S, dv)

    # torch: matmul(scores, V).reshape(y.shape[0], y.shape[1], -1)
    ctx = ctx.reshape(By, Sy, -1)
    out = linear(ctx.reshape(By * Sy, ctx.shape[-1]), p["wo"], p["bo"])
    return out.reshape(By, Sy, d_model)


# ----------------------------------------------------------------------------
# Positional encoding (constant table; computed with jnp on the wrapper side)
# TODO(synk): Positional_Encoding table is a constant; not worth a kernel.
# ----------------------------------------------------------------------------
def positional_encoding(seq_len, embedding_dim, d_model):
    pos = jnp.arange(seq_len, dtype=jnp.float32)[:, None]
    i = jnp.arange(embedding_dim, dtype=jnp.float32)[None, :]
    even = (jnp.arange(embedding_dim) % 2 == 0)[None, :]
    ang_even = pos / jnp.power(1000.0, 2.0 * i / d_model)
    ang_odd = pos / jnp.power(10000.0, 2.0 * i / d_model)
    return jnp.where(even, jnp.sin(ang_even), jnp.cos(ang_odd))


# ----------------------------------------------------------------------------
# Encoder / Decoder / Transformer_layer wiring
# ----------------------------------------------------------------------------
def encoder_forward(x, params, n_heads, d_model):
    x = x + positional_encoding(x.shape[1], d_model, d_model)[None]
    attn = multihead_attention(x, x, params["attn"], n_heads, d_model)
    h = add_layer_norm(x, attn)
    ffn = feed_forward(h, *params["ffn"])
    return add_layer_norm(h, ffn)


def decoder_forward(x, enc_out, params, n_heads, d_model):
    x = x + positional_encoding(x.shape[1], d_model, d_model)[None]
    a1 = multihead_attention(x, x, params["attn"], n_heads, d_model)        # mask is a no-op
    h1 = add_layer_norm(x, a1)
    a2 = multihead_attention(h1, enc_out, params["attn"], n_heads, d_model)
    h2 = add_layer_norm(h1, a2)
    ffn = feed_forward(h2, *params["ffn"])
    return add_layer_norm(h2, ffn)


def transformer_layer(x_input, x_output, enc_params, dec_params, *, n_heads, d_model):
    # TODO(synk): original forward references undefined self.decoder; wired to Decoder.
    enc_out = encoder_forward(x_input, enc_params, n_heads, d_model)
    dec_out = decoder_forward(x_output, enc_out, dec_params, n_heads, d_model)
    return enc_out, dec_out


# ----------------------------------------------------------------------------
# Pure-JAX reference (for correctness check)
# ----------------------------------------------------------------------------
def _linear_ref(x, w, b):
    return x @ w + b


def _mha_ref(x, y, p, n_heads, d_model):
    B, S, _ = x.shape
    dim_k = p["wq"].shape[1]
    dim_v = p["wv"].shape[1]
    dk = dim_k // n_heads
    dv = dim_v // n_heads
    Q = _linear_ref(x, p["wq"], p["bq"]).reshape(-1, B, S, dk)
    K = _linear_ref(x, p["wk"], p["bk"]).reshape(-1, B, S, dk)
    V = _linear_ref(y, p["wv"], p["bv"]).reshape(-1, B, S, dv)
    scores = jnp.einsum("hbqd,hbkd->hbqk", Q, K) * (1.0 / math.sqrt(d_model))
    ctx = jnp.einsum("hbqk,hbkd->hbqd", scores, V).reshape(y.shape[0], y.shape[1], -1)
    return _linear_ref(ctx, p["wo"], p["bo"])


def _add_norm_ref(x, sub):
    v = x + sub
    mean = v.mean(axis=(1, 2), keepdims=True)
    var = ((v - mean) ** 2).mean(axis=(1, 2), keepdims=True)
    return (v - mean) / jnp.sqrt(var + 1e-5)


def _ffn_ref(x, w1, b1, w2, b2):
    return jnp.maximum(x @ w1 + b1, 0.0) @ w2 + b2


def _encoder_ref(x, p, n_heads, d_model):
    x = x + positional_encoding(x.shape[1], d_model, d_model)[None]
    h = _add_norm_ref(x, _mha_ref(x, x, p["attn"], n_heads, d_model))
    return _add_norm_ref(h, _ffn_ref(h, *p["ffn"]))


def _decoder_ref(x, enc_out, p, n_heads, d_model):
    x = x + positional_encoding(x.shape[1], d_model, d_model)[None]
    h = _add_norm_ref(x, _mha_ref(x, x, p["attn"], n_heads, d_model))
    h = _add_norm_ref(h, _mha_ref(h, enc_out, p["attn"], n_heads, d_model))
    return _add_norm_ref(h, _ffn_ref(h, *p["ffn"]))


# ----------------------------------------------------------------------------
# Parameter init (PyTorch nn.Linear style, stored pre-transposed as (in, out))
# ----------------------------------------------------------------------------
def _init_linear(key, fan_in, fan_out, dtype=jnp.float32):
    kw, kb = jax.random.split(key)
    bound = 1.0 / math.sqrt(fan_in)
    w = jax.random.uniform(kw, (fan_in, fan_out), minval=-bound, maxval=bound, dtype=dtype)
    b = jax.random.uniform(kb, (fan_out,), minval=-bound, maxval=bound, dtype=dtype)
    return w, b


def _init_block(key, d_model, dim_k, dim_v, hidden):
    assert dim_k == dim_v, "original module requires dim_k == dim_v (v projects to dim_k)"
    keys = jax.random.split(key, 6)
    wq, bq = _init_linear(keys[0], d_model, dim_k)
    wk, bk = _init_linear(keys[1], d_model, dim_k)
    wv, bv = _init_linear(keys[2], d_model, dim_k)   # nn.Linear(d_model, dim_k) per original
    wo, bo = _init_linear(keys[3], dim_v, d_model)
    w1, b1 = _init_linear(keys[4], d_model, hidden)
    w2, b2 = _init_linear(keys[5], hidden, d_model)
    return {"attn": {"wq": wq, "bq": bq, "wk": wk, "bk": bk,
                     "wv": wv, "bv": bv, "wo": wo, "bo": bo},
            "ffn": (w1, b1, w2, b2)}


# ----------------------------------------------------------------------------
if __name__ == "__main__":
    # Small, mostly lane-dense config.
    d_model, dim_k, dim_v, n_heads, hidden = 128, 64, 64, 4, 256
    batch, seq = 2, 8

    key = jax.random.PRNGKey(0)
    k_xi, k_xo, k_enc, k_dec = jax.random.split(key, 4)
    x_input = jax.random.normal(k_xi, (batch, seq, d_model), dtype=jnp.float32)
    x_output = jax.random.normal(k_xo, (batch, seq, d_model), dtype=jnp.float32)

    enc_params = _init_block(k_enc, d_model, dim_k, dim_v, hidden)
    dec_params = _init_block(k_dec, d_model, dim_k, dim_v, hidden)

    fwd = jax.jit(lambda xi, xo, ep, dp: transformer_layer(
        xi, xo, ep, dp, n_heads=n_heads, d_model=d_model))

    enc_out, dec_out = fwd(x_input, x_output, enc_params, dec_params)
    enc_out, dec_out = jax.block_until_ready((enc_out, dec_out))

    enc_ref = _encoder_ref(x_input, enc_params, n_heads, d_model)
    dec_ref = _decoder_ref(x_output, enc_ref, dec_params, n_heads, d_model)

    assert enc_out.shape == (batch, seq, d_model)
    assert dec_out.shape == (batch, seq, d_model)
    err_e = float(jnp.max(jnp.abs(enc_out - enc_ref)))
    err_d = float(jnp.max(jnp.abs(dec_out - dec_ref)))
    assert jnp.allclose(enc_out, enc_ref, atol=2e-3, rtol=2e-3), err_e
    assert jnp.allclose(dec_out, dec_ref, atol=2e-3, rtol=2e-3), err_d

    print("KERNEL_OK")
</pallas_src>

<mosaic_0001>
module attributes {stable_mosaic.version = 11 : i64} {
  func.func @linear_kernel(%arg0: i32, %arg1: i32, %arg2: memref<16x128xf32, #tpu.memory_space<vmem>>, %arg3: memref<128x128xf32, #tpu.memory_space<vmem>>, %arg4: memref<1x128xf32, #tpu.memory_space<vmem>>, %arg5: memref<16x128xf32, #tpu.memory_space<vmem>>, %arg6: memref<16x128xf32, #tpu.memory_space<vmem>>) attributes {dimension_semantics = [#tpu.dimension_semantics<parallel>, #tpu.dimension_semantics<arbitrary>], iteration_bounds = array<i64: 1, 1>, scalar_prefetch = 0 : i64, scratch_operands = 1 : i64, tpu.core_type = #tpu.core_type<tc>, window_params = [{transform_indices = @transform_0, window_bounds = array<i64: 16, 128>}, {transform_indices = @transform_1, window_bounds = array<i64: 128, 128>}, {pipeline_mode = #tpu.pipeline_mode<synchronous>, transform_indices = @transform_2, window_bounds = array<i64: 1, 128>}, {transform_indices = @transform_3, window_bounds = array<i64: 16, 128>}]} {
    %c0_i32 = arith.constant 0 : i32
    %0 = arith.cmpi eq, %arg1, %c0_i32 : i32
    %1 = arith.extui %0 : i1 to i32
    %c0_i32_0 = arith.constant 0 : i32
    %2 = arith.cmpi ne, %1, %c0_i32_0 : i32
    scf.if %2 {
      %cst_10 = arith.constant 0.000000e+00 : f32
      %12 = vector.broadcast %cst_10 : f32 to vector<16x128xf32>
      %c0_11 = arith.constant 0 : index
      %c0_12 = arith.constant 0 : index
      %13 = vector.load %arg6[%c0_11, %c0_12] : memref<16x128xf32, #tpu.memory_space<vmem>>, vector<16x128xf32>
      tpu.vector_store %arg6[%c0_11, %c0_12], %12 {strides = array<i32>} : memref<16x128xf32, #tpu.memory_space<vmem>>, vector<16x128xf32>,
    } else {
    }
    %c0 = arith.constant 0 : index
    %c0_1 = arith.constant 0 : index
    %3 = vector.load %arg6[%c0, %c0_1] : memref<16x128xf32, #tpu.memory_space<vmem>>, vector<16x128xf32>
    %c0_2 = arith.constant 0 : index
    %c0_3 = arith.constant 0 : index
    %4 = vector.load %arg2[%c0_2, %c0_3] : memref<16x128xf32, #tpu.memory_space<vmem>>, vector<16x128xf32>
    %c0_4 = arith.constant 0 : index
    %c0_5 = arith.constant 0 : index
    %5 = vector.load %arg3[%c0_4, %c0_5] : memref<128x128xf32, #tpu.memory_space<vmem>>, vector<128x128xf32>
    %cst = arith.constant dense<0.000000e+00> : vector<16x128xf32>
    %6 = tpu.matmul %4, %5, %cst {dimension_numbers = #tpu.dot_dimension_numbers<[1], [0], [0], [1], [0, 0, 1, 1], [], []>} : vector<16x128xf32>, vector<128x128xf32>, vector<16x128xf32> -> vector<16x128xf32>
    %7 = arith.addf %3, %6 : vector<16x128xf32>
    %c0_6 = arith.constant 0 : index
    %c0_7 = arith.constant 0 : index
    %8 = vector.load %arg6[%c0_6, %c0_7] : memref<16x128xf32, #tpu.memory_space<vmem>>, vector<16x128xf32>
    tpu.vector_store %arg6[%c0_6, %c0_7], %7 {strides = array<i32>} : memref<16x128xf32, #tpu.memory_space<vmem>>, vector<16x128xf32>,
    %c0_i32_8 = arith.constant 0 : i32
    %9 = arith.cmpi eq, %arg1, %c0_i32_8 : i32
    %10 = arith.extui %9 : i1 to i32
    %c0_i32_9 = arith.constant 0 : i32
    %11 = arith.cmpi ne, %10, %c0_i32_9 : i32
    scf.if %11 {
      %c0_10 = arith.constant 0 : index
      %c0_11 = arith.constant 0 : index
      %12 = vector.load %arg6[%c0_10, %c0_11] : memref<16x128xf32, #tpu.memory_space<vmem>>, vector<16x128xf32>
      %c0_12 = arith.constant 0 : index
      %c0_13 = arith.constant 0 : index
      %13 = vector.load %arg4[%c0_12, %c0_13] : memref<1x128xf32, #tpu.memory_space<vmem>>, vector<1x128xf32>
      %14 = vector.broadcast %13 : vector<1x128xf32> to vector<16x128xf32>
      %15 = arith.addf %12, %14 : vector<16x128xf32>
      %c0_14 = arith.constant 0 : index
      %c0_15 = arith.constant 0 : index
      %16 = vector.load %arg5[%c0_14, %c0_15] : memref<16x128xf32, #tpu.memory_space<vmem>>, vector<16x128xf32>
      tpu.vector_store %arg5[%c0_14, %c0_15], %15 {strides = array<i32>} : memref<16x128xf32, #tpu.memory_space<vmem>>, vector<16x128xf32>,
    } else {
    }
    return
  }
  func.func @transform_0(%arg0: i32, %arg1: i32) -> (i32, i32) {
    %c0_i32 = arith.constant 0 : i32
    return %arg0, %arg1 : i32, i32
  }
  func.func @transform_1(%arg0: i32, %arg1: i32) -> (i32, i32) {
    %c0_i32 = arith.constant 0 : i32
    %c0_i32_0 = arith.constant 0 : i32
    return %arg1, %c0_i32 : i32, i32
  }
  func.func @transform_2(%arg0: i32, %arg1: i32) -> (i32, i32) {
    %c0_i32 = arith.constant 0 : i32
    %c0_i32_0 = arith.constant 0 : i32
    %c0_i32_1 = arith.constant 0 : i32
    return %c0_i32, %c0_i32_0 : i32, i32
  }
  func.func @transform_3(%arg0: i32, %arg1: i32) -> (i32, i32) {
    %c0_i32 = arith.constant 0 : i32
    %c0_i32_0 = arith.constant 0 : i32
    return %arg0, %c0_i32 : i32, i32
  }
}

module attributes {stable_mosaic.version = 11 : i64} {
  func.func @attn_core_kernel(%arg0: i32, %arg1: memref<1x8x128xf32, #tpu.memory_space<vmem>>, %arg2: memref<1x8x128xf32, #tpu.memory_space<vmem>>, %arg3: memref<1x8x128xf32, #tpu.memory_space<vmem>>, %arg4: memref<1x8x128xf32, #tpu.memory_space<vmem>>) attributes {dimension_semantics = [#tpu.dimension_semantics<parallel>], iteration_bounds = array<i64: 8>, scalar_prefetch = 0 : i64, scratch_operands = 0 : i64, tpu.core_type = #tpu.core_type<tc>, window_params = [{transform_indices = @transform_0, window_bounds = array<i64: 1, 8, 128>}, {transform_indices = @transform_1, window_bounds = array<i64: 1, 8, 128>}, {transform_indices = @transform_2, window_bounds = array<i64: 1, 8, 128>}, {transform_indices = @transform_3, window_bounds = array<i64: 1, 8, 128>}]} {
    %c0 = arith.constant 0 : index
    %c0_0 = arith.constant 0 : index
    %c0_1 = arith.constant 0 : index
    %0 = vector.load %arg1[%c0, %c0_0, %c0_1] : memref<1x8x128xf32, #tpu.memory_space<vmem>>, vector<1x8x128xf32>
    %1 = vector.shape_cast %0 : vector<1x8x128xf32> to vector<8x128xf32>
    %c0_2 = arith.constant 0 : index
    %c0_3 = arith.constant 0 : index
    %c0_4 = arith.constant 0 : index
    %2 = vector.load %arg2[%c0_2, %c0_3, %c0_4] : memref<1x8x128xf32, #tpu.memory_space<vmem>>, vector<1x8x128xf32>
    %3 = vector.shape_cast %2 : vector<1x8x128xf32> to vector<8x128xf32>
    %c0_5 = arith.constant 0 : index
    %c0_6 = arith.constant 0 : index
    %c0_7 = arith.constant 0 : index
    %4 = vector.load %arg3[%c0_5, %c0_6, %c0_7] : memref<1x8x128xf32, #tpu.memory_space<vmem>>, vector<1x8x128xf32>
    %5 = vector.shape_cast %4 : vector<1x8x128xf32> to vector<8x128xf32>
    %cst = arith.constant dense<0.000000e+00> : vector<8x8xf32>
    %6 = tpu.matmul %1, %3, %cst {dimension_numbers = #tpu.dot_dimension_numbers<[1], [1], [0], [0], [0, 0, 1, 0], [], []>} : vector<8x128xf32>, vector<8x128xf32>, vector<8x8xf32> -> vector<8x8xf32>
    %cst_8 = arith.constant 0.0883883461 : f32
    %7 = vector.broadcast %cst_8 : f32 to vector<8x8xf32>
    %8 = arith.mulf %6, %7 : vector<8x8xf32>
    %cst_9 = arith.constant dense<0.000000e+00> : vector<8x128xf32>
    %9 = tpu.matmul %8, %5, %cst_9 {dimension_numbers = #tpu.dot_dimension_numbers<[1], [0], [0], [1], [0, 0, 1, 1], [], []>} : vector<8x8xf32>, vector<8x128xf32>, vector<8x128xf32> -> vector<8x128xf32>
    %c0_10 = arith.constant 0 : index
    %c0_11 = arith.constant 0 : index
    %c0_12 = arith.constant 0 : index
    %10 = vector.load %arg4[%c0_10, %c0_11, %c0_12] : memref<1x8x128xf32, #tpu.memory_space<vmem>>, vector<1x8x128xf32>
    %11 = vector.shape_cast %10 : vector<1x8x128xf32> to vector<8x128xf32>
    %12 = vector.shape_cast %9 : vector<8x128xf32> to vector<1x8x128xf32>
    tpu.vector_store %arg4[%c0_10, %c0_11, %c0_12], %12 {strides = array<i32>} : memref<1x8x128xf32, #tpu.memory_space<vmem>>, vector<1x8x128xf32>,
    return
  }
  func.func @transform_0(%arg0: i32) -> (i32, i32, i32) {
    %c0_i32 = arith.constant 0 : i32
    %c0_i32_0 = arith.constant 0 : i32
    %c0_i32_1 = arith.constant 0 : i32
    return %arg0, %c0_i32, %c0_i32_0 : i32, i32, i32
  }
  func.func @transform_1(%arg0: i32) -> (i32, i32, i32) {
    %c0_i32 = arith.constant 0 : i32
    %c0_i32_0 = arith.constant 0 : i32
    %c0_i32_1 = arith.constant 0 : i32
    return %arg0, %c0_i32, %c0_i32_0 : i32, i32, i32
  }
  func.func @transform_2(%arg0: i32) -> (i32, i32, i32) {
    %c0_i32 = arith.constant 0 : i32
    %c0_i32_0 = arith.constant 0 : i32
    %c0_i32_1 = arith.constant 0 : i32
    return %arg0, %c0_i32, %c0_i32_0 : i32, i32, i32
  }
  func.func @transform_3(%arg0: i32) -> (i32, i32, i32) {
    %c0_i32 = arith.constant 0 : i32
    %c0_i32_0 = arith.constant 0 : i32
    %c0_i32_1 = arith.constant 0 : i32
    return %arg0, %c0_i32, %c0_i32_0 : i32, i32, i32
  }
}

module attributes {stable_mosaic.version = 11 : i64} {
  func.func @ffn_kernel(%arg0: i32, %arg1: i32, %arg2: memref<16x128xf32, #tpu.memory_space<vmem>>, %arg3: memref<128x256xf32, #tpu.memory_space<vmem>>, %arg4: memref<1x256xf32, #tpu.memory_space<vmem>>, %arg5: memref<256x128xf32, #tpu.memory_space<vmem>>, %arg6: memref<1x128xf32, #tpu.memory_space<vmem>>, %arg7: memref<16x128xf32, #tpu.memory_space<vmem>>, %arg8: memref<16x128xf32, #tpu.memory_space<vmem>>) attributes {dimension_semantics = [#tpu.dimension_semantics<parallel>, #tpu.dimension_semantics<arbitrary>], iteration_bounds = array<i64: 1, 1>, scalar_prefetch = 0 : i64, scratch_operands = 1 : i64, tpu.core_type = #tpu.core_type<tc>, window_params = [{transform_indices = @transform_0, window_bounds = array<i64: 16, 128>}, {transform_indices = @transform_1, window_bounds = array<i64: 128, 256>}, {transform_indices = @transform_2, window_bounds = array<i64: 1, 256>}, {transform_indices = @transform_3, window_bounds = array<i64: 256, 128>}, {pipeline_mode = #tpu.pipeline_mode<synchronous>, transform_indices = @transform_4, window_bounds = array<i64: 1, 128>}, {transform_indices = @transform_5, window_bounds = array<i64: 16, 128>}]} {
    %c0_i32 = arith.constant 0 : i32
    %0 = arith.cmpi eq, %arg1, %c0_i32 : i32
    %1 = arith.extui %0 : i1 to i32
    %c0_i32_0 = arith.constant 0 : i32
    %2 = arith.cmpi ne, %1, %c0_i32_0 : i32
    scf.if %2 {
      %cst_16 = arith.constant 0.000000e+00 : f32
      %19 = vector.broadcast %cst_16 : f32 to vector<16x128xf32>
      %c0_17 = arith.constant 0 : index
      %c0_18 = arith.constant 0 : index
      %20 = vector.load %arg8[%c0_17, %c0_18] : memref<16x128xf32, #tpu.memory_space<vmem>>, vector<16x128xf32>
      tpu.vector_store %arg8[%c0_17, %c0_18], %19 {strides = array<i32>} : memref<16x128xf32, #tpu.memory_space<vmem>>, vector<16x128xf32>,
    } else {
    }
    %c0 = arith.constant 0 : index
    %c0_1 = arith.constant 0 : index
    %3 = vector.load %arg2[%c0, %c0_1] : memref<16x128xf32, #tpu.memory_space<vmem>>, vector<16x128xf32>
    %c0_2 = arith.constant 0 : index
    %c0_3 = arith.constant 0 : index
    %4 = vector.load %arg3[%c0_2, %c0_3] : memref<128x256xf32, #tpu.memory_space<vmem>>, vector<128x256xf32>
    %cst = arith.constant dense<0.000000e+00> : vector<16x256xf32>
    %5 = tpu.matmul %3, %4, %cst {dimension_numbers = #tpu.dot_dimension_numbers<[1], [0], [0], [1], [0, 0, 1, 1], [], []>} : vector<16x128xf32>, vector<128x256xf32>, vector<16x256xf32> -> vector<16x256xf32>
    %c0_4 = arith.constant 0 : index
    %c0_5 = arith.constant 0 : index
    %6 = vector.load %arg4[%c0_4, %c0_5] : memref<1x256xf32, #tpu.memory_space<vmem>>, vector<1x256xf32>
    %7 = vector.broadcast %6 : vector<1x256xf32> to vector<16x256xf32>
    %8 = arith.addf %5, %7 : vector<16x256xf32>
    %cst_6 = arith.constant 0.000000e+00 : f32
    %9 = vector.broadcast %cst_6 : f32 to vector<16x256xf32>
    %10 = arith.maximumf %8, %9 : vector<16x256xf32>
    %c0_7 = arith.constant 0 : index
    %c0_8 = arith.constant 0 : index
    %11 = vector.load %arg8[%c0_7, %c0_8] : memref<16x128xf32, #tpu.memory_space<vmem>>, vector<16x128xf32>
    %c0_9 = arith.constant 0 : index
    %c0_10 = arith.constant 0 : index
    %12 = vector.load %arg5[%c0_9, %c0_10] : memref<256x128xf32, #tpu.memory_space<vmem>>, vector<256x128xf32>
    %cst_11 = arith.constant dense<0.000000e+00> : vector<16x128xf32>
    %13 = tpu.matmul %10, %12, %cst_11 {dimension_numbers = #tpu.dot_dimension_numbers<[1], [0], [0], [1], [0, 0, 1, 1], [], []>} : vector<16x256xf32>, vector<256x128xf32>, vector<16x128xf32> -> vector<16x128xf32>
    %14 = arith.addf %11, %13 : vector<16x128xf32>
    %c0_12 = arith.constant 0 : index
    %c0_13 = arith.constant 0 : index
    %15 = vector.load %arg8[%c0_12, %c0_13] : memref<16x128xf32, #tpu.memory_space<vmem>>, vector<16x128xf32>
    tpu.vector_store %arg8[%c0_12, %c0_13], %14 {strides = array<i32>} : memref<16x128xf32, #tpu.memory_space<vmem>>, vector<16x128xf32>,
    %c0_i32_14 = arith.constant 0 : i32
    %16 = arith.cmpi eq, %arg1, %c0_i32_14 : i32
    %17 = arith.extui %16 : i1 to i32
    %c0_i32_15 = arith.constant 0 : i32
    %18 = arith.cmpi ne, %17, %c0_i32_15 : i32
    scf.if %18 {
      %c0_16 = arith.constant 0 : index
      %c0_17 = arith.constant 0 : index
      %19 = vector.load %arg8[%c0_16, %c0_17] : memref<16x128xf32, #tpu.memory_space<vmem>>, vector<16x128xf32>
      %c0_18 = arith.constant 0 : index
      %c0_19 = arith.constant 0 : index
      %20 = vector.load %arg6[%c0_18, %c0_19] : memref<1x128xf32, #tpu.memory_space<vmem>>, vector<1x128xf32>
      %21 = vector.broadcast %20 : vector<1x128xf32> to vector<16x128xf32>
      %22 = arith.addf %19, %21 : vector<16x128xf32>
      %c0_20 = arith.constant 0 : index
      %c0_21 = arith.constant 0 : index
      %23 = vector.load %arg7[%c0_20, %c0_21] : memref<16x128xf32, #tpu.memory_space<vmem>>, vector<16x128xf32>
      tpu.vector_store %arg7[%c0_20, %c0_21], %22 {strides = array<i32>} : memref<16x128xf32, #tpu.memory_space<vmem>>, vector<16x128xf32>,
    } else {
    }
    return
  }
  func.func @transform_0(%arg0: i32, %arg1: i32) -> (i32, i32) {
    %c0_i32 = arith.constant 0 : i32
    %c0_i32_0 = arith.constant 0 : i32
    return %arg0, %c0_i32 : i32, i32
  }
  func.func @transform_1(%arg0: i32, %arg1: i32) -> (i32, i32) {
    %c0_i32 = arith.constant 0 : i32
    %c0_i32_0 = arith.constant 0 : i32
    return %c0_i32, %arg1 : i32, i32
  }
  func.func @transform_2(%arg0: i32, %arg1: i32) -> (i32, i32) {
    %c0_i32 = arith.constant 0 : i32
    %c0_i32_0 = arith.constant 0 : i32
    return %c0_i32, %arg1 : i32, i32
  }
  func.func @transform_3(%arg0: i32, %arg1: i32) -> (i32, i32) {
    %c0_i32 = arith.constant 0 : i32
    %c0_i32_0 = arith.constant 0 : i32
    return %arg1, %c0_i32 : i32, i32
  }
  func.func @transform_4(%arg0: i32, %arg1: i32) -> (i32, i32) {
    %c0_i32 = arith.constant 0 : i32
    %c0_i32_0 = arith.constant 0 : i32
    %c0_i32_1 = arith.constant 0 : i32
    return %c0_i32, %c0_i32_0 : i32, i32
  }
  func.func @transform_5(%arg0: i32, %arg1: i32) -> (i32, i32) {
    %c0_i32 = arith.constant 0 : i32
    %c0_i32_0 = arith.constant 0 : i32
    return %arg0, %c0_i32 : i32, i32
  }
}

module attributes {stable_mosaic.version = 11 : i64} {
  func.func @add_layer_norm_kernel(%arg0: i32, %arg1: memref<1x8x128xf32, #tpu.memory_space<vmem>>, %arg2: memref<1x8x128xf32, #tpu.memory_space<vmem>>, %arg3: memref<1x8x128xf32, #tpu.memory_space<vmem>>) attributes {dimension_semantics = [#tpu.dimension_semantics<parallel>], iteration_bounds = array<i64: 2>, scalar_prefetch = 0 : i64, scratch_operands = 0 : i64, tpu.core_type = #tpu.core_type<tc>, window_params = [{transform_indices = @transform_0, window_bounds = array<i64: 1, 8, 128>}, {transform_indices = @transform_1, window_bounds = array<i64: 1, 8, 128>}, {transform_indices = @transform_2, window_bounds = array<i64: 1, 8, 128>}]} {
    %c0 = arith.constant 0 : index
    %c0_0 = arith.constant 0 : index
    %c0_1 = arith.constant 0 : index
    %0 = vector.load %arg1[%c0, %c0_0, %c0_1] : memref<1x8x128xf32, #tpu.memory_space<vmem>>, vector<1x8x128xf32>
    %1 = vector.shape_cast %0 : vector<1x8x128xf32> to vector<8x128xf32>
    %c0_2 = arith.constant 0 : index
    %c0_3 = arith.constant 0 : index
    %c0_4 = arith.constant 0 : index
    %2 = vector.load %arg2[%c0_2, %c0_3, %c0_4] : memref<1x8x128xf32, #tpu.memory_space<vmem>>, vector<1x8x128xf32>
    %3 = vector.shape_cast %2 : vector<1x8x128xf32> to vector<8x128xf32>
    %4 = arith.addf %1, %3 : vector<8x128xf32>
    %5 = vector.shape_cast %4 : vector<8x128xf32> to vector<1x8x128xf32>
    %cst = arith.constant dense<0.000000e+00> : vector<1xf32>
    %6 = vector.multi_reduction <add>, %5, %cst [1, 2] : vector<1x8x128xf32> to vector<1xf32>
    %7 = vector.shape_cast %6 : vector<1xf32> to vector<1x1x1xf32>
    %8 = vector.extract %7[0, 0, 0] : f32 from vector<1x1x1xf32>
    %9 = vector.broadcast %8 : f32 to vector<1x1xf32>
    %cst_5 = arith.constant 1.024000e+03 : f32
    %10 = vector.broadcast %cst_5 : f32 to vector<1x1xf32>
    %11 = arith.divf %9, %10 : vector<1x1xf32>
    %12 = vector.broadcast %11 : vector<1x1xf32> to vector<8x128xf32>
    %13 = arith.subf %4, %12 : vector<8x128xf32>
    %14 = arith.mulf %13, %13 : vector<8x128xf32>
    %15 = vector.shape_cast %14 : vector<8x128xf32> to vector<1x8x128xf32>
    %cst_6 = arith.constant dense<0.000000e+00> : vector<1xf32>
    %16 = vector.multi_reduction <add>, %15, %cst_6 [1, 2] : vector<1x8x128xf32> to vector<1xf32>
    %17 = vector.shape_cast %16 : vector<1xf32> to vector<1x1x1xf32>
    %18 = vector.extract %17[0, 0, 0] : f32 from vector<1x1x1xf32>
    %19 = vector.broadcast %18 : f32 to vector<1x1xf32>
    %cst_7 = arith.constant 1.024000e+03 : f32
    %20 = vector.broadcast %cst_7 : f32 to vector<1x1xf32>
    %21 = arith.divf %19, %20 : vector<1x1xf32>
    %cst_8 = arith.constant 9.99999974E-6 : f32
    %22 = vector.broadcast %cst_8 : f32 to vector<1x1xf32>
    %23 = arith.addf %21, %22 : vector<1x1xf32>
    %24 = math.rsqrt %23 : vector<1x1xf32>
    %25 = vector.broadcast %24 : vector<1x1xf32> to vector<8x128xf32>
    %26 = arith.mulf %13, %25 : vector<8x128xf32>
    %c0_9 = arith.constant 0 : index
    %c0_10 = arith.constant 0 : index
    %c0_11 = arith.constant 0 : index
    %27 = vector.load %arg3[%c0_9, %c0_10, %c0_11] : memref<1x8x128xf32, #tpu.memory_space<vmem>>, vector<1x8x128xf32>
    %28 = vector.shape_cast %27 : vector<1x8x128xf32> to vector<8x128xf32>
    %29 = vector.shape_cast %26 : vector<8x128xf32> to vector<1x8x128xf32>
    tpu.vector_store %arg3[%c0_9, %c0_10, %c0_11], %29 {strides = array<i32>} : memref<1x8x128xf32, #tpu.memory_space<vmem>>, vector<1x8x128xf32>,
    return
  }
  func.func @transform_0(%arg0: i32) -> (i32, i32, i32) {
    %c0_i32 = arith.constant 0 : i32
    %c0_i32_0 = arith.constant 0 : i32
    %c0_i32_1 = arith.constant 0 : i32
    return %arg0, %c0_i32, %c0_i32_0 : i32, i32, i32
  }
  func.func @transform_1(%arg0: i32) -> (i32, i32, i32) {
    %c0_i32 = arith.constant 0 : i32
    %c0_i32_0 = arith.constant 0 : i32
    %c0_i32_1 = arith.constant 0 : i32
    return %arg0, %c0_i32, %c0_i32_0 : i32, i32, i32
  }
  func.func @transform_2(%arg0: i32) -> (i32, i32, i32) {
    %c0_i32 = arith.constant 0 : i32
    %c0_i32_0 = arith.constant 0 : i32
    %c0_i32_1 = arith.constant 0 : i32
    return %arg0, %c0_i32, %c0_i32_0 : i32, i32, i32
  }
}

module attributes {stable_mosaic.version = 11 : i64} {
  func.func @add_layer_norm_kernel(%arg0: i32, %arg1: memref<1x8x128xf32, #tpu.memory_space<vmem>>, %arg2: memref<1x8x128xf32, #tpu.memory_space<vmem>>, %arg3: memref<1x8x128xf32, #tpu.memory_space<vmem>>) attributes {dimension_semantics = [#tpu.dimension_semantics<parallel>], iteration_bounds = array<i64: 2>, scalar_prefetch = 0 : i64, scratch_operands = 0 : i64, tpu.core_type = #tpu.core_type<tc>, window_params = [{transform_indices = @transform_0, window_bounds = array<i64: 1, 8, 128>}, {transform_indices = @transform_1, window_bounds = array<i64: 1, 8, 128>}, {transform_indices = @transform_2, window_bounds = array<i64: 1, 8, 128>}]} {
    %c0 = arith.constant 0 : index
    %c0_0 = arith.constant 0 : index
    %c0_1 = arith.constant 0 : index
    %0 = vector.load %arg1[%c0, %c0_0, %c0_1] : memref<1x8x128xf32, #tpu.memory_space<vmem>>, vector<1x8x128xf32>
    %1 = vector.shape_cast %0 : vector<1x8x128xf32> to vector<8x128xf32>
    %c0_2 = arith.constant 0 : index
    %c0_3 = arith.constant 0 : index
    %c0_4 = arith.constant 0 : index
    %2 = vector.load %arg2[%c0_2, %c0_3, %c0_4] : memref<1x8x128xf32, #tpu.memory_space<vmem>>, vector<1x8x128xf32>
    %3 = vector.shape_cast %2 : vector<1x8x128xf32> to vector<8x128xf32>
    %4 = arith.addf %1, %3 : vector<8x128xf32>
    %5 = vector.shape_cast %4 : vector<8x128xf32> to vector<1x8x128xf32>
    %cst = arith.constant dense<0.000000e+00> : vector<1xf32>
    %6 = vector.multi_reduction <add>, %5, %cst [1, 2] : vector<1x8x128xf32> to vector<1xf32>
    %7 = vector.shape_cast %6 : vector<1xf32> to vector<1x1x1xf32>
    %8 = vector.extract %7[0, 0, 0] : f32 from vector<1x1x1xf32>
    %9 = vector.broadcast %8 : f32 to vector<1x1xf32>
    %cst_5 = arith.constant 1.024000e+03 : f32
    %10 = vector.broadcast %cst_5 : f32 to vector<1x1xf32>
    %11 = arith.divf %9, %10 : vector<1x1xf32>
    %12 = vector.broadcast %11 : vector<1x1xf32> to vector<8x128xf32>
    %13 = arith.subf %4, %12 : vector<8x128xf32>
    %14 = arith.mulf %13, %13 : vector<8x128xf32>
    %15 = vector.shape_cast %14 : vector<8x128xf32> to vector<1x8x128xf32>
    %cst_6 = arith.constant dense<0.000000e+00> : vector<1xf32>
    %16 = vector.multi_reduction <add>, %15, %cst_6 [1, 2] : vector<1x8x128xf32> to vector<1xf32>
    %17 = vector.shape_cast %16 : vector<1xf32> to vector<1x1x1xf32>
    %18 = vector.extract %17[0, 0, 0] : f32 from vector<1x1x1xf32>
    %19 = vector.broadcast %18 : f32 to vector<1x1xf32>
    %cst_7 = arith.constant 1.024000e+03 : f32
    %20 = vector.broadcast %cst_7 : f32 to vector<1x1xf32>
    %21 = arith.divf %19, %20 : vector<1x1xf32>
    %cst_8 = arith.constant 9.99999974E-6 : f32
    %22 = vector.broadcast %cst_8 : f32 to vector<1x1xf32>
    %23 = arith.addf %21, %22 : vector<1x1xf32>
    %24 = math.rsqrt %23 : vector<1x1xf32>
    %25 = vector.broadcast %24 : vector<1x1xf32> to vector<8x128xf32>
    %26 = arith.mulf %13, %25 : vector<8x128xf32>
    %c0_9 = arith.constant 0 : index
    %c0_10 = arith.constant 0 : index
    %c0_11 = arith.constant 0 : index
    %27 = vector.load %arg3[%c0_9, %c0_10, %c0_11] : memref<1x8x128xf32, #tpu.memory_space<vmem>>, vector<1x8x128xf32>
    %28 = vector.shape_cast %27 : vector<1x8x128xf32> to vector<8x128xf32>
    %29 = vector.shape_cast %26 : vector<8x128xf32> to vector<1x8x128xf32>
    tpu.vector_store %arg3[%c0_9, %c0_10, %c0_11], %29 {strides = array<i32>} : memref<1x8x128xf32, #tpu.memory_space<vmem>>, vector<1x8x128xf32>,
    return
  }
  func.func @transform_0(%arg0: i32) -> (i32, i32, i32) {
    %c0_i32 = arith.constant 0 : i32
    %c0_i32_0 = arith.constant 0 : i32
    %c0_i32_1 = arith.constant 0 : i32
    return %arg0, %c0_i32, %c0_i32_0 : i32, i32, i32
  }
  func.func @transform_1(%arg0: i32) -> (i32, i32, i32) {
    %c0_i32 = arith.constant 0 : i32
    %c0_i32_0 = arith.constant 0 : i32
    %c0_i32_1 = arith.constant 0 : i32
    return %arg0, %c0_i32, %c0_i32_0 : i32, i32, i32
  }
  func.func @transform_2(%arg0: i32) -> (i32, i32, i32) {
    %c0_i32 = arith.constant 0 : i32
    %c0_i32_0 = arith.constant 0 : i32
    %c0_i32_1 = arith.constant 0 : i32
    return %arg0, %c0_i32, %c0_i32_0 : i32, i32, i32
  }
}

</mosaic_0001>

<llo_original>
// kernel: _lambda_.20
$region0: #{_lambda_.20}
  #allocation0 [shape = 'u32[]', space=smem, size = 0x4, offset = 0x4, fixed_abs, tag = 'smem constant byte address 0x4 - core index']
  #allocation1 [shape = 'u32[72,128]{1,0:T(1,128)}', space=vmem, size = 0x9000, scoped, tag = 'internal scratch']
  #allocation2 [shape = 'f32[16,128]{1,0:T(8,128)}', space=vmem, size = 0x2000, scoped, tag = 'scratch operand']
  %s0 = inlined_call_operand.vmem [shape: f32[16,128], index: 0, kind: input, shape index: {}]
  %s1 = inlined_call_operand.vmem [shape: f32[128,128], index: 1, kind: input, shape index: {}]
  %s2 = inlined_call_operand.vmem [shape: f32[1,128], index: 2, kind: input, shape index: {}]
  %s3 = inlined_call_operand.vmem [shape: f32[16,128], index: 3, kind: output, shape index: {}]
  %s4 = sld [smem:[#allocation0]]
  $region30: #{_lambda_.20} parent=0
    _
  %s6 = ssub.s32 1, %s4
  %s7 = scalar_select 0, %s6, %s4
  // Predicated region
  $region2: #{_lambda_.20} parent=0 // pred_check
    _
  $region3: #{_lambda_.20} parent=0 // pred_check_branch
    %9 = sbr.rel (0) target = $region5
  $region4: #{_lambda_.20} parent=0 // pred_region
    _
  $region5: #{_lambda_.20} parent=0 // pred_fallthru
    _
  // Predicated region
  $region6: #{_lambda_.20} parent=0 // pred_check
    _
  $region7: #{_lambda_.20} parent=0 // pred_check_branch
    %11 = sbr.rel (0) target = $region9
  $region8: #{_lambda_.20} parent=0 // pred_region
    _
  $region9: #{_lambda_.20} parent=0 // pred_fallthru
    _
  // Predicated region
  $region10: #{_lambda_.20} parent=0 // pred_check
    _
  $region11: #{_lambda_.20} parent=0 // pred_check_branch
    %13 = sbr.rel (0) target = $region13
  $region12: #{_lambda_.20} parent=0 // pred_region
    _
  $region13: #{_lambda_.20} parent=0 // pred_fallthru
    _
  %p14 = scmp.eq.s32.totalorder 0, 0
  // Predicated region
  $region14: #{_lambda_.20} parent=0 // pred_check
    %p15 = pneg %p14
  $region15: #{_lambda_.20} parent=0 // pred_check_branch
    %17 = sbr.rel (%p15) target = $region17
  $region16: #{_lambda_.20} parent=0 // pred_region
    %18 = vst [vmem:[#allocation2] sm:$0xff] 0.0
    %19 = vst [vmem:[#allocation2 + $0x8] sm:$0xff] 0.0
  $region17: #{_lambda_.20} parent=0 // pred_fallthru
    _
  %v20 = vld [vmem:[#allocation2] sm:$0xff]
  %v21 = vld [vmem:[#allocation2 + $0x8] sm:$0xff]
  %v22 = vld [vmem:[%s0] sm:$0xff]
  %v23 = vld [vmem:[%s0 + $0x8] sm:$0xff]
  %v24 = vld [vmem:[%s1] sm:$0xff]
  %v25 = vld [vmem:[%s1 + $0x8] sm:$0xff]
  %v26 = vld [vmem:[%s1 + $0x10] sm:$0xff]
  %v27 = vld [vmem:[%s1 + $0x18] sm:$0xff]
  %v28 = vld [vmem:[%s1 + $0x20] sm:$0xff]
  %v29 = vld [vmem:[%s1 + $0x28] sm:$0xff]
  %v30 = vld [vmem:[%s1 + $0x30] sm:$0xff]
  %v31 = vld [vmem:[%s1 + $0x38] sm:$0xff]
  %v32 = vld [vmem:[%s1 + $0x40] sm:$0xff]
  %v33 = vld [vmem:[%s1 + $0x48] sm:$0xff]
  %v34 = vld [vmem:[%s1 + $0x50] sm:$0xff]
  %v35 = vld [vmem:[%s1 + $0x58] sm:$0xff]
  %v36 = vld [vmem:[%s1 + $0x60] sm:$0xff]
  %v37 = vld [vmem:[%s1 + $0x68] sm:$0xff]
  %v38 = vld [vmem:[%s1 + $0x70] sm:$0xff]
  %v39 = vld [vmem:[%s1 + $0x78] sm:$0xff]
  %40 = vmatpush.msra.mxu0 %v39
  %41 = vmatpush.msra.mxu0 %v38
  %42 = vmatpush.msra.mxu0 %v37
  %43 = vmatpush.msra.mxu0 %v36
  %44 = vmatpush.msra.mxu0 %v35
  %45 = vmatpush.msra.mxu0 %v34
  %46 = vmatpush.msra.mxu0 %v33
  %47 = vmatpush.msra.mxu0 %v32
  %48 = vmatpush.msra.mxu0 %v31
  %49 = vmatpush.msra.mxu0 %v30
  %50 = vmatpush.msra.mxu0 %v29
  %51 = vmatpush.msra.mxu0 %v28
  %52 = vmatpush.msra.mxu0 %v27
  %53 = vmatpush.msra.mxu0 %v26
  %54 = vmatpush.msra.mxu0 %v25
  %55 = vmatpush.msra.mxu0 %v24
  %56 = vmatmul.f32.gmra.mxu0 %v22
  %v57 = vpop.f32.mrf.mxu0
  %v58 = vadd.f32 0.0, %v57
  %59 = vmatmul.f32.gmra.mxu0 %v23
  %v60 = vpop.f32.mrf.mxu0
  %v61 = vadd.f32 0.0, %v60
  %62 = vdwg.mxu0
  %v63 = vadd.f32 %v20, %v58
  %v64 = vadd.f32 %v21, %v61
  %65 = vst [vmem:[#allocation2] sm:$0xff] %v63
  %66 = vst [vmem:[#allocation2 + $0x8] sm:$0xff] %v64
  // Predicated region
  $region18: #{_lambda_.20} parent=0 // pred_check
    %p67 = pneg %p14
  $region19: #{_lambda_.20} parent=0 // pred_check_branch
    %69 = sbr.rel (%p67) target = $region21
  $region20: #{_lambda_.20} parent=0 // pred_region
    %v70 = vld [vmem:[#allocation2] sm:$0xff]
    %v71 = vld [vmem:[#allocation2 + $0x8] sm:$0xff]
    %v72 = vld [vmem:[%s2] sm:$0x1]
    %v74 = vperm.slane %v72, 0
    %v76 = vadd.f32 %v70, %v74
    %v77 = vadd.f32 %v71, %v74
    %78 = vst [vmem:[%s3] sm:$0xff] %v76
    %79 = vst [vmem:[%s3 + $0x8] sm:$0xff] %v77
  $region21: #{_lambda_.20} parent=0 // pred_fallthru
    _
  // Predicated region
  $region22: #{_lambda_.20} parent=0 // pred_check
    _
  $region23: #{_lambda_.20} parent=0 // pred_check_branch
    %81 = sbr.rel (0) target = $region25
  $region24: #{_lambda_.20} parent=0 // pred_region
    _
  $region25: #{_lambda_.20} parent=0 // pred_fallthru
    _
  // Predicated region
  $region26: #{_lambda_.20} parent=0 // pred_check
    _
  $region27: #{_lambda_.20} parent=0 // pred_check_branch
    %83 = sbr.rel (0) target = $region29
  $region28: #{_lambda_.20} parent=0 // pred_region
    _
  $region29: #{_lambda_.20} parent=0 // pred_fallthru
    _

// kernel: _lambda_.21
$region0: #{_lambda_.21}
  #allocation0 [shape = 'u32[]', space=smem, size = 0x4, offset = 0x4, fixed_abs, tag = 'smem constant byte address 0x4 - core index']
  #allocation1 [shape = 'u32[72,128]{1,0:T(1,128)}', space=vmem, size = 0x9000, scoped, tag = 'internal scratch']
  %s0 = inlined_call_operand.vmem [shape: f32[8,8,128], index: 0, kind: input, shape index: {}]
  %s1 = inlined_call_operand.vmem [shape: f32[8,8,128], index: 1, kind: input, shape index: {}]
  %s2 = inlined_call_operand.vmem [shape: f32[8,8,128], index: 2, kind: input, shape index: {}]
  %s3 = inlined_call_operand.vmem [shape: f32[8,8,128], index: 3, kind: output, shape index: {}]
  %s4 = sld [smem:[#allocation0]]
  $region45: #{_lambda_.21} parent=0
    _
  %s6 = ssub.s32 1, %s4
  %s7 = scalar_select 0, %s6, %s4
  loop: start=0, step=1, limit=10
  $region2: #{_lambda_.21} parent=0 // loop_pre_header
    _
  $region3: #{_lambda_.21} parent=0 // loop_header
    %s9 = sphi 0, %s13
    %p10 = scmp.ge.s32.totalorder %s9, 10
    %s19 = sphi 0, %s21
    %s22 = sphi 0, %s19
    %s23 = sphi 0, %s22
    %s39 = sphi 0, %s23
    %s45 = sphi 0, %s47
    %s48 = sphi 0, %s45
    %s49 = sphi 0, %s48
    %s65 = sphi 0, %s49
    %s71 = sphi 0, %s73
    %s74 = sphi 0, %s71
    %s75 = sphi 0, %s74
    %s91 = sphi 0, %s75
    %s97 = sphi 0, %s99
    %s100 = sphi 0, %s97
    %s101 = sphi 0, %s100
    %s117 = sphi 0, %s101
  $region4: #{_lambda_.21} parent=0 // loop_header_branch
    %12 = sbr.rel (%p10) target = $region8
  $region5: #{_lambda_.21} parent=0 // loop_body
    %s14 = ssub.s32 %s9, 1
    %s15 = ssub.s32 %s9, 2
    %s16 = sadd.s32 %s9, 1
    %s17 = ssub.s32 %s9, %s16
    %p18 = scmp.eq.s32.totalorder %s17, 0
    %s20 = sadd.s32 %s19, 1
    %s21 = scalar_select %p18, %s19, %s20
    %p24 = pneg %p18
    %p25 = scmp.eq.s32.totalorder %s9, 7
    %p26 = por %p24, %p25
    %p27 = scmp.ne.s32.totalorder %s19, %s22
    %p28 = scmp.eq.s32.totalorder %s9, 0
    %p29 = por %p27, %p28
    %p30 = scmp.ne.s32.totalorder %s19, %s22
    %p31 = scmp.eq.s32.totalorder %s14, 7
    %p32 = por %p30, %p31
    %p33 = scmp.ne.s32.totalorder %s22, %s23
    %p34 = scmp.eq.s32.totalorder %s14, 0
    %p35 = por %p33, %p34
    %p36 = scmp.ne.s32.totalorder %s22, %s23
    %p37 = scmp.eq.s32.totalorder %s15, 7
    %p38 = por %p36, %p37
    %p40 = scmp.ne.s32.totalorder %s23, %s39
    %p41 = scmp.eq.s32.totalorder %s15, 0
    %p42 = por %p40, %p41
    %s43 = ssub.s32 %s9, %s16
    %p44 = scmp.eq.s32.totalorder %s43, 0
    %s46 = sadd.s32 %s45, 1
    %s47 = scalar_select %p44, %s45, %s46
    %p50 = pneg %p44
    %p51 = scmp.eq.s32.totalorder %s9, 7
    %p52 = por %p50, %p51
    %p53 = scmp.ne.s32.totalorder %s45, %s48
    %p54 = scmp.eq.s32.totalorder %s9, 0
    %p55 = por %p53, %p54
    %p56 = scmp.ne.s32.totalorder %s45, %s48
    %p57 = scmp.eq.s32.totalorder %s14, 7
    %p58 = por %p56, %p57
    %p59 = scmp.ne.s32.totalorder %s48, %s49
    %p60 = scmp.eq.s32.totalorder %s14, 0
    %p61 = por %p59, %p60
    %p62 = scmp.ne.s32.totalorder %s48, %s49
    %p63 = scmp.eq.s32.totalorder %s15, 7
    %p64 = por %p62, %p63
    %p66 = scmp.ne.s32.totalorder %s49, %s65
    %p67 = scmp.eq.s32.totalorder %s15, 0
    %p68 = por %p66, %p67
    %s69 = ssub.s32 %s9, %s16
    %p70 = scmp.eq.s32.totalorder %s69, 0
    %s72 = sadd.s32 %s71, 1
    %s73 = scalar_select %p70, %s71, %s72
    %p76 = pneg %p70
    %p77 = scmp.eq.s32.totalorder %s9, 7
    %p78 = por %p76, %p77
    %p79 = scmp.ne.s32.totalorder %s71, %s74
    %p80 = scmp.eq.s32.totalorder %s9, 0
    %p81 = por %p79, %p80
    %p82 = scmp.ne.s32.totalorder %s71, %s74
    %p83 = scmp.eq.s32.totalorder %s14, 7
    %p84 = por %p82, %p83
    %p85 = scmp.ne.s32.totalorder %s74, %s75
    %p86 = scmp.eq.s32.totalorder %s14, 0
    %p87 = por %p85, %p86
    %p88 = scmp.ne.s32.totalorder %s74, %s75
    %p89 = scmp.eq.s32.totalorder %s15, 7
    %p90 = por %p88, %p89
    %p92 = scmp.ne.s32.totalorder %s75, %s91
    %p93 = scmp.eq.s32.totalorder %s15, 0
    %p94 = por %p92, %p93
    %s95 = ssub.s32 %s9, %s16
    %p96 = scmp.eq.s32.totalorder %s95, 0
    %s98 = sadd.s32 %s97, 1
    %s99 = scalar_select %p96, %s97, %s98
    %p102 = pneg %p96
    %p103 = scmp.eq.s32.totalorder %s9, 7
    %p104 = por %p102, %p103
    %p105 = scmp.ne.s32.totalorder %s97, %s100
    %p106 = scmp.eq.s32.totalorder %s9, 0
    %p107 = por %p105, %p106
    %p108 = scmp.ne.s32.totalorder %s97, %s100
    %p109 = scmp.eq.s32.totalorder %s14, 7
    %p110 = por %p108, %p109
    %p111 = scmp.ne.s32.totalorder %s100, %s101
    %p112 = scmp.eq.s32.totalorder %s14, 0
    %p113 = por %p111, %p112
    %p114 = scmp.ne.s32.totalorder %s100, %s101
    %p115 = scmp.eq.s32.totalorder %s15, 7
    %p116 = por %p114, %p115
    %p118 = scmp.ne.s32.totalorder %s101, %s117
    %p119 = scmp.eq.s32.totalorder %s15, 0
    %p120 = por %p118, %p119
    %p121 = scmp.le.s32.totalorder 1, %s9
    %p122 = scmp.lt.s32.totalorder %s9, 9
    %p123 = pnand %p121, %p122
    %p124 = pneg %p123
    // Predicated region
    $region9: #{_lambda_.21} parent=5 // pred_check
      _
    $region10: #{_lambda_.21} parent=5 // pred_check_branch
      %126 = sbr.rel (%p123) target = $region12
    $region11: #{_lambda_.21} parent=5 // pred_region
      %s127 = ssub.s32 %s9, 1
    $region12: #{_lambda_.21} parent=5 // pred_fallthru
      _
    %p128 = scmp.lt.s32.totalorder %s9, 8
    // Predicated region
    $region13: #{_lambda_.21} parent=5 // pred_check
      %p129 = pneg %p128
    $region14: #{_lambda_.21} parent=5 // pred_check_branch
      %131 = sbr.rel (%p129) target = $region16
    $region15: #{_lambda_.21} parent=5 // pred_region
      // Predicated region
      $region17: #{_lambda_.21} parent=15 // pred_check
        %p132 = pneg %p29
      $region18: #{_lambda_.21} parent=15 // pred_check_branch
        %134 = sbr.rel (%p132) target = $region20
      $region19: #{_lambda_.21} parent=15 // pred_region
        %p135 = scmp.lt.s32.totalorder %s9, 7
        %s136 = scalar_select %p135, %s9, 7
        %s137 = smul.addr %s136, 8
        %s138 = scalar_lea.vmem %s0, %s137
      $region20: #{_lambda_.21} parent=15 // pred_fallthru
        _
      // Predicated region
      $region21: #{_lambda_.21} parent=15 // pred_check
        %p139 = pneg %p55
      $region22: #{_lambda_.21} parent=15 // pred_check_branch
        %141 = sbr.rel (%p139) target = $region24
      $region23: #{_lambda_.21} parent=15 // pred_region
        %p142 = scmp.lt.s32.totalorder %s9, 7
        %s143 = scalar_select %p142, %s9, 7
        %s144 = smul.addr %s143, 8
        %s145 = scalar_lea.vmem %s1, %s144
      $region24: #{_lambda_.21} parent=15 // pred_fallthru
        _
      // Predicated region
      $region25: #{_lambda_.21} parent=15 // pred_check
        %p146 = pneg %p81
      $region26: #{_lambda_.21} parent=15 // pred_check_branch
        %148 = sbr.rel (%p146) target = $region28
      $region27: #{_lambda_.21} parent=15 // pred_region
        %p149 = scmp.lt.s32.totalorder %s9, 7
        %s150 = scalar_select %p149, %s9, 7
        %s151 = smul.addr %s150, 8
        %s152 = scalar_lea.vmem %s2, %s151
      $region28: #{_lambda_.21} parent=15 // pred_fallthru
        _
    $region16: #{_lambda_.21} parent=5 // pred_fallthru
      _
    %p153 = scmp.le.s32.totalorder 1, %s9
    %p154 = scmp.lt.s32.totalorder %s9, 9
    %p155 = pnand %p153, %p154
    %p156 = pneg %p155
    // Predicated region
    $region29: #{_lambda_.21} parent=5 // pred_check
      _
    $region30: #{_lambda_.21} parent=5 // pred_check_branch
      %158 = sbr.rel (%p155) target = $region32
    $region31: #{_lambda_.21} parent=5 // pred_region
      %s159 = ssub.s32 %s9, 1
      %p160 = scmp.lt.s32.totalorder %s14, 7
      %s161 = scalar_select %p160, %s14, 7
      %s162 = smul.addr %s161, 8
      %s163 = scalar_lea.vmem %s0, %s162
      %p164 = pneg %p35
      %p165 = pneg %p32
      %p166 = scmp.lt.s32.totalorder %s14, 7
      %s167 = scalar_select %p166, %s14, 7
      %s168 = smul.addr %s167, 8
      %s169 = scalar_lea.vmem %s1, %s168
      %p170 = pneg %p61
      %p171 = pneg %p58
      %p172 = scmp.lt.s32.totalorder %s14, 7
      %s173 = scalar_select %p172, %s14, 7
      %s174 = smul.addr %s173, 8
      %s175 = scalar_lea.vmem %s2, %s174
      %p176 = pneg %p87
      %p177 = pneg %p84
      %p178 = pneg %p113
      %p179 = pneg %p110
      %p180 = scmp.lt.s32.totalorder %s14, 7
      %s181 = scalar_select %p180, %s14, 7
      %s182 = smul.addr %s181, 8
      %s183 = scalar_lea.vmem %s3, %s182
      %p184 = scmp.lt.s32.totalorder %s14, 7
      %s185 = scalar_select %p184, %s14, 7
      %s186 = smul.addr %s185, 8
      %s187 = scalar_lea.vmem %s0, %s186
      %p188 = scmp.lt.s32.totalorder %s14, 7
      %s189 = scalar_select %p188, %s14, 7
      %s190 = smul.addr %s189, 8
      %s191 = scalar_lea.vmem %s1, %s190
      %p192 = scmp.lt.s32.totalorder %s14, 7
      %s193 = scalar_select %p192, %s14, 7
      %s194 = smul.addr %s193, 8
      %s195 = scalar_lea.vmem %s2, %s194
      %p196 = scmp.lt.s32.totalorder %s14, 7
      %s197 = scalar_select %p196, %s14, 7
      %s198 = smul.addr %s197, 8
      %s199 = scalar_lea.vmem %s3, %s198
      %v200 = vld [vmem:[%s187] sm:$0xff]
      %v201 = vld [vmem:[%s191] sm:$0xff]
      %v202 = vld [vmem:[%s195] sm:$0xff]
      %203 = vmatpush.xpose.msra.mxu0 0.0
      %204 = vmatpush.xpose.msra.mxu0 0.0
      %205 = vmatpush.xpose.msra.mxu0 0.0
      %206 = vmatpush.xpose.msra.mxu0 0.0
      %207 = vmatpush.xpose.msra.mxu0 0.0
      %208 = vmatpush.xpose.msra.mxu0 0.0
      %209 = vmatpush.xpose.msra.mxu0 0.0
      %210 = vmatpush.xpose.msra.mxu0 0.0
      %211 = vmatpush.xpose.msra.mxu0 0.0
      %212 = vmatpush.xpose.msra.mxu0 0.0
      %213 = vmatpush.xpose.msra.mxu0 0.0
      %214 = vmatpush.xpose.msra.mxu0 0.0
      %215 = vmatpush.xpose.msra.mxu0 0.0
      %216 = vmatpush.xpose.msra.mxu0 0.0
      %217 = vmatpush.xpose.msra.mxu0 0.0
      %218 = vmatpush.xpose.msra.mxu0 %v201
      %219 = vmatmul.f32.gmra.mxu0 %v200
      %v220 = vpop.f32.mrf.mxu0
      %v221 = vadd.f32 0.0, %v220
      %222 = vdwg.mxu0
      %v223 = vmul.f32 %v221, 0.088388346
      %vm224 = vcmask 64512
      %v226 = vsel %vm224, %v223, 0
      %228 = vmatpush.msra.mxu0 0.0
      %229 = vmatpush.msra.mxu0 0.0
      %230 = vmatpush.msra.mxu0 0.0
      %231 = vmatpush.msra.mxu0 0.0
      %232 = vmatpush.msra.mxu0 0.0
      %233 = vmatpush.msra.mxu0 0.0
      %234 = vmatpush.msra.mxu0 0.0
      %235 = vmatpush.msra.mxu0 0.0
      %236 = vmatpush.msra.mxu0 0.0
      %237 = vmatpush.msra.mxu0 0.0
      %238 = vmatpush.msra.mxu0 0.0
      %239 = vmatpush.msra.mxu0 0.0
      %240 = vmatpush.msra.mxu0 0.0
      %241 = vmatpush.msra.mxu0 0.0
      %242 = vmatpush.msra.mxu0 0.0
      %243 = vmatpush.msra.mxu0 %v202
      %244 = vmatmul.f32.gmra.mxu0 %v226
      %v245 = vpop.f32.mrf.mxu0
      %v246 = vadd.f32 0.0, %v245
      %247 = vdwg.mxu0
      %248 = vst [vmem:[%s199] sm:$0xff] %v246
      %p249 = scmp.lt.s32.totalorder %s14, 7
      %s250 = scalar_select %p249, %s14, 7
      %s251 = smul.addr %s250, 8
      %s252 = scalar_lea.vmem %s3, %s251
      // Predicated region
      $region33: #{_lambda_.21} parent=31 // pred_check
        %p253 = pneg %p110
      $region34: #{_lambda_.21} parent=31 // pred_check_branch
        %255 = sbr.rel (%p253) target = $region36
      $region35: #{_lambda_.21} parent=31 // pred_region
        _
      $region36: #{_lambda_.21} parent=31 // pred_fallthru
        _
    $region32: #{_lambda_.21} parent=5 // pred_fallthru
      _
    %p256 = scmp.le.s32.totalorder 2, %s9
    // Predicated region
    $region37: #{_lambda_.21} parent=5 // pred_check
      %p257 = pneg %p256
    $region38: #{_lambda_.21} parent=5 // pred_check_branch
      %259 = sbr.rel (%p257) target = $region40
    $region39: #{_lambda_.21} parent=5 // pred_region
      %s260 = ssub.s32 %s9, 2
      // Predicated region
      $region41: #{_lambda_.21} parent=39 // pred_check
        %p261 = pneg %p116
      $region42: #{_lambda_.21} parent=39 // pred_check_branch
        %263 = sbr.rel (%p261) target = $region44
      $region43: #{_lambda_.21} parent=39 // pred_region
        %p264 = scmp.lt.s32.totalorder %s15, 7
        %s265 = scalar_select %p264, %s15, 7
        %s266 = smul.addr %s265, 8
        %s267 = scalar_lea.vmem %s3, %s266
      $region44: #{_lambda_.21} parent=39 // pred_fallthru
        _
    $region40: #{_lambda_.21} parent=5 // pred_fallthru
      _
  $region6: #{_lambda_.21} parent=0 // loop_footer
    %s13 = sadd.s32 1, %s9
  $region7: #{_lambda_.21} parent=0 // loop_footer_branch
    %8 = sbr.rel target = $region3
  $region8: #{_lambda_.21} parent=0 // loop_exit
    _

// kernel: _lambda_.23
$region0: #{_lambda_.23}
  #allocation0 [shape = 'u32[]', space=smem, size = 0x4, offset = 0x4, fixed_abs, tag = 'smem constant byte address 0x4 - core index']
  #allocation1 [shape = 'u32[72,128]{1,0:T(1,128)}', space=vmem, size = 0x9000, scoped, tag = 'internal scratch']
  %s0 = inlined_call_operand.vmem [shape: f32[2,8,128], index: 0, kind: input, shape index: {}]
  %s1 = inlined_call_operand.vmem [shape: f32[2,8,128], index: 1, kind: input, shape index: {}]
  %s2 = inlined_call_operand.vmem [shape: f32[2,8,128], index: 2, kind: output, shape index: {}]
  %s3 = sld [smem:[#allocation0]]
  $region41: #{_lambda_.23} parent=0
    _
  %s5 = ssub.s32 1, %s3
  %s6 = scalar_select 0, %s5, %s3
  loop: start=0, step=1, limit=4
  $region2: #{_lambda_.23} parent=0 // loop_pre_header
    _
  $region3: #{_lambda_.23} parent=0 // loop_header
    %s8 = sphi 0, %s12
    %p9 = scmp.ge.s32.totalorder %s8, 4
    %s18 = sphi 0, %s20
    %s21 = sphi 0, %s18
    %s22 = sphi 0, %s21
    %s38 = sphi 0, %s22
    %s44 = sphi 0, %s46
    %s47 = sphi 0, %s44
    %s48 = sphi 0, %s47
    %s64 = sphi 0, %s48
    %s70 = sphi 0, %s72
    %s73 = sphi 0, %s70
    %s74 = sphi 0, %s73
    %s90 = sphi 0, %s74
  $region4: #{_lambda_.23} parent=0 // loop_header_branch
    %11 = sbr.rel (%p9) target = $region8
  $region5: #{_lambda_.23} parent=0 // loop_body
    %s13 = ssub.s32 %s8, 1
    %s14 = ssub.s32 %s8, 2
    %s15 = sadd.s32 %s8, 1
    %s16 = ssub.s32 %s8, %s15
    %p17 = scmp.eq.s32.totalorder %s16, 0
    %s19 = sadd.s32 %s18, 1
    %s20 = scalar_select %p17, %s18, %s19
    %p23 = pneg %p17
    %p24 = scmp.eq.s32.totalorder %s8, 1
    %p25 = por %p23, %p24
    %p26 = scmp.ne.s32.totalorder %s18, %s21
    %p27 = scmp.eq.s32.totalorder %s8, 0
    %p28 = por %p26, %p27
    %p29 = scmp.ne.s32.totalorder %s18, %s21
    %p30 = scmp.eq.s32.totalorder %s13, 1
    %p31 = por %p29, %p30
    %p32 = scmp.ne.s32.totalorder %s21, %s22
    %p33 = scmp.eq.s32.totalorder %s13, 0
    %p34 = por %p32, %p33
    %p35 = scmp.ne.s32.totalorder %s21, %s22
    %p36 = scmp.eq.s32.totalorder %s14, 1
    %p37 = por %p35, %p36
    %p39 = scmp.ne.s32.totalorder %s22, %s38
    %p40 = scmp.eq.s32.totalorder %s14, 0
    %p41 = por %p39, %p40
    %s42 = ssub.s32 %s8, %s15
    %p43 = scmp.eq.s32.totalorder %s42, 0
    %s45 = sadd.s32 %s44, 1
    %s46 = scalar_select %p43, %s44, %s45
    %p49 = pneg %p43
    %p50 = scmp.eq.s32.totalorder %s8, 1
    %p51 = por %p49, %p50
    %p52 = scmp.ne.s32.totalorder %s44, %s47
    %p53 = scmp.eq.s32.totalorder %s8, 0
    %p54 = por %p52, %p53
    %p55 = scmp.ne.s32.totalorder %s44, %s47
    %p56 = scmp.eq.s32.totalorder %s13, 1
    %p57 = por %p55, %p56
    %p58 = scmp.ne.s32.totalorder %s47, %s48
    %p59 = scmp.eq.s32.totalorder %s13, 0
    %p60 = por %p58, %p59
    %p61 = scmp.ne.s32.totalorder %s47, %s48
    %p62 = scmp.eq.s32.totalorder %s14, 1
    %p63 = por %p61, %p62
    %p65 = scmp.ne.s32.totalorder %s48, %s64
    %p66 = scmp.eq.s32.totalorder %s14, 0
    %p67 = por %p65, %p66
    %s68 = ssub.s32 %s8, %s15
    %p69 = scmp.eq.s32.totalorder %s68, 0
    %s71 = sadd.s32 %s70, 1
    %s72 = scalar_select %p69, %s70, %s71
    %p75 = pneg %p69
    %p76 = scmp.eq.s32.totalorder %s8, 1
    %p77 = por %p75, %p76
    %p78 = scmp.ne.s32.totalorder %s70, %s73
    %p79 = scmp.eq.s32.totalorder %s8, 0
    %p80 = por %p78, %p79
    %p81 = scmp.ne.s32.totalorder %s70, %s73
    %p82 = scmp.eq.s32.totalorder %s13, 1
    %p83 = por %p81, %p82
    %p84 = scmp.ne.s32.totalorder %s73, %s74
    %p85 = scmp.eq.s32.totalorder %s13, 0
    %p86 = por %p84, %p85
    %p87 = scmp.ne.s32.totalorder %s73, %s74
    %p88 = scmp.eq.s32.totalorder %s14, 1
    %p89 = por %p87, %p88
    %p91 = scmp.ne.s32.totalorder %s74, %s90
    %p92 = scmp.eq.s32.totalorder %s14, 0
    %p93 = por %p91, %p92
    %p94 = scmp.le.s32.totalorder 1, %s8
    %p95 = scmp.lt.s32.totalorder %s8, 3
    %p96 = pnand %p94, %p95
    %p97 = pneg %p96
    // Predicated region
    $region9: #{_lambda_.23} parent=5 // pred_check
      _
    $region10: #{_lambda_.23} parent=5 // pred_check_branch
      %99 = sbr.rel (%p96) target = $region12
    $region11: #{_lambda_.23} parent=5 // pred_region
      %s100 = ssub.s32 %s8, 1
    $region12: #{_lambda_.23} parent=5 // pred_fallthru
      _
    %p101 = scmp.lt.s32.totalorder %s8, 2
    // Predicated region
    $region13: #{_lambda_.23} parent=5 // pred_check
      %p102 = pneg %p101
    $region14: #{_lambda_.23} parent=5 // pred_check_branch
      %104 = sbr.rel (%p102) target = $region16
    $region15: #{_lambda_.23} parent=5 // pred_region
      // Predicated region
      $region17: #{_lambda_.23} parent=15 // pred_check
        %p105 = pneg %p28
      $region18: #{_lambda_.23} parent=15 // pred_check_branch
        %107 = sbr.rel (%p105) target = $region20
      $region19: #{_lambda_.23} parent=15 // pred_region
        %p108 = scmp.lt.s32.totalorder %s8, 1
        %s109 = scalar_select %p108, %s8, 1
        %s110 = smul.addr %s109, 8
        %s111 = scalar_lea.vmem %s0, %s110
      $region20: #{_lambda_.23} parent=15 // pred_fallthru
        _
      // Predicated region
      $region21: #{_lambda_.23} parent=15 // pred_check
        %p112 = pneg %p54
      $region22: #{_lambda_.23} parent=15 // pred_check_branch
        %114 = sbr.rel (%p112) target = $region24
      $region23: #{_lambda_.23} parent=15 // pred_region
        %p115 = scmp.lt.s32.totalorder %s8, 1
        %s116 = scalar_select %p115, %s8, 1
        %s117 = smul.addr %s116, 8
        %s118 = scalar_lea.vmem %s1, %s117
      $region24: #{_lambda_.23} parent=15 // pred_fallthru
        _
    $region16: #{_lambda_.23} parent=5 // pred_fallthru
      _
    %p119 = scmp.le.s32.totalorder 1, %s8
    %p120 = scmp.lt.s32.totalorder %s8, 3
    %p121 = pnand %p119, %p120
    %p122 = pneg %p121
    // Predicated region
    $region25: #{_lambda_.23} parent=5 // pred_check
      _
    $region26: #{_lambda_.23} parent=5 // pred_check_branch
      %124 = sbr.rel (%p121) target = $region28
    $region27: #{_lambda_.23} parent=5 // pred_region
      %s125 = ssub.s32 %s8, 1
      %p126 = scmp.lt.s32.totalorder %s13, 1
      %s127 = scalar_select %p126, %s13, 1
      %s128 = smul.addr %s127, 8
      %s129 = scalar_lea.vmem %s0, %s128
      %p130 = pneg %p34
      %p131 = pneg %p31
      %p132 = scmp.lt.s32.totalorder %s13, 1
      %s133 = scalar_select %p132, %s13, 1
      %s134 = smul.addr %s133, 8
      %s135 = scalar_lea.vmem %s1, %s134
      %p136 = pneg %p60
      %p137 = pneg %p57
      %p138 = pneg %p86
      %p139 = pneg %p83
      %p140 = scmp.lt.s32.totalorder %s13, 1
      %s141 = scalar_select %p140, %s13, 1
      %s142 = smul.addr %s141, 8
      %s143 = scalar_lea.vmem %s2, %s142
      %p144 = scmp.lt.s32.totalorder %s13, 1
      %s145 = scalar_select %p144, %s13, 1
      %s146 = smul.addr %s145, 8
      %s147 = scalar_lea.vmem %s0, %s146
      %p148 = scmp.lt.s32.totalorder %s13, 1
      %s149 = scalar_select %p148, %s13, 1
      %s150 = smul.addr %s149, 8
      %s151 = scalar_lea.vmem %s1, %s150
      %p152 = scmp.lt.s32.totalorder %s13, 1
      %s153 = scalar_select %p152, %s13, 1
      %s154 = smul.addr %s153, 8
      %s155 = scalar_lea.vmem %s2, %s154
      %v156 = vld [vmem:[%s147] sm:$0xff]
      %v157 = vld [vmem:[%s151] sm:$0xff]
      %v158 = vadd.f32 %v156, %v157
      %159 = vadd.xlane.f32.xlu0 %v158
      %v160 = vpop.xlane.xlu0 %159
      %v161 = vrot.slane %v160, 4
      %v162 = vadd.f32 %v160, %v161
      %v163 = vrot.slane %v162, 2
      %v164 = vadd.f32 %v162, %v163
      %v165 = vrot.slane %v164, 1
      %v166 = vadd.f32 %v164, %v165
      %s167 = vtos %v166
      %v168 = vstv %s167
      %v169 = vrcp.pop 1024.0
      %v170 = vmul.f32 1024.0, %v169
      %v171 = vsub.f32 1.0, %v170
      %v172 = vmul.f32 %v169, %v171
      %v173 = vadd.f32 %v169, %v172
      %vm174 = vweird.f32 %v169
      %v175 = vsel %vm174, %v169, %v173
      %v176 = vmul.f32 %v168, %v175
      %v177 = vsub.f32 %v158, %v176
      %v178 = vmul.f32 %v177, %v177
      %179 = vadd.xlane.f32.xlu0 %v178
      %v180 = vpop.xlane.xlu0 %179
      %v181 = vrot.slane %v180, 4
      %v182 = vadd.f32 %v180, %v181
      %v183 = vrot.slane %v182, 2
      %v184 = vadd.f32 %v182, %v183
      %v185 = vrot.slane %v184, 1
      %v186 = vadd.f32 %v184, %v185
      %s187 = vtos %v186
      %v188 = vstv %s187
      %v189 = vmul.f32 %v188, %v175
      %v190 = vadd.f32 %v189, 1e-05
      %v191 = vrsqrt.pop %v190
      %v192 = vmul.f32 %v191, %v190
      %v193 = vmul.f32 %v192, %v191
      %v194 = vmul.f32 0.5, %v193
      %v195 = vsub.f32 1.5, %v194
      %v196 = vmul.f32 %v191, %v195
      %vm197 = vweird.f32 %v190
      %vm198 = vweird.f32 %v191
      %vm199 = vmor %vm197, %vm198
      %v200 = vsel %vm199, %v191, %v196
      %v201 = vmul.f32 %v177, %v200
      %202 = vst [vmem:[%s155] sm:$0xff] %v201
      %p203 = scmp.lt.s32.totalorder %s13, 1
      %s204 = scalar_select %p203, %s13, 1
      %s205 = smul.addr %s204, 8
      %s206 = scalar_lea.vmem %s2, %s205
      // Predicated region
      $region29: #{_lambda_.23} parent=27 // pred_check
        %p207 = pneg %p83
      $region30: #{_lambda_.23} parent=27 // pred_check_branch
        %209 = sbr.rel (%p207) target = $region32
      $region31: #{_lambda_.23} parent=27 // pred_region
        _
      $region32: #{_lambda_.23} parent=27 // pred_fallthru
        _
    $region28: #{_lambda_.23} parent=5 // pred_fallthru
      _
    %p210 = scmp.le.s32.totalorder 2, %s8
    // Predicated region
    $region33: #{_lambda_.23} parent=5 // pred_check
      %p211 = pneg %p210
    $region34: #{_lambda_.23} parent=5 // pred_check_branch
      %213 = sbr.rel (%p211) target = $region36
    $region35: #{_lambda_.23} parent=5 // pred_region
      %s214 = ssub.s32 %s8, 2
      // Predicated region
      $region37: #{_lambda_.23} parent=35 // pred_check
        %p215 = pneg %p89
      $region38: #{_lambda_.23} parent=35 // pred_check_branch
        %217 = sbr.rel (%p215) target = $region40
      $region39: #{_lambda_.23} parent=35 // pred_region
        %p218 = scmp.lt.s32.totalorder %s14, 1
        %s219 = scalar_select %p218, %s14, 1
        %s220 = smul.addr %s219, 8
        %s221 = scalar_lea.vmem %s2, %s220
      $region40: #{_lambda_.23} parent=35 // pred_fallthru
        _
    $region36: #{_lambda_.23} parent=5 // pred_fallthru
      _
  $region6: #{_lambda_.23} parent=0 // loop_footer
    %s12 = sadd.s32 1, %s8
  $region7: #{_lambda_.23} parent=0 // loop_footer_branch
    %7 = sbr.rel target = $region3
  $region8: #{_lambda_.23} parent=0 // loop_exit
    _

// kernel: _lambda_.24
$region0: #{_lambda_.24}
  #allocation0 [shape = 'u32[]', space=smem, size = 0x4, offset = 0x4, fixed_abs, tag = 'smem constant byte address 0x4 - core index']
  #allocation1 [shape = 'u32[72,128]{1,0:T(1,128)}', space=vmem, size = 0x9000, scoped, tag = 'internal scratch']
  #allocation2 [shape = 'f32[16,128]{1,0:T(8,128)}', space=vmem, size = 0x2000, scoped, tag = 'scratch operand']
  %s0 = inlined_call_operand.vmem [shape: f32[16,128], index: 0, kind: input, shape index: {}]
  %s1 = inlined_call_operand.vmem [shape: f32[128,256], index: 1, kind: input, shape index: {}]
  %s2 = inlined_call_operand.vmem [shape: f32[1,256], index: 2, kind: input, shape index: {}]
  %s3 = inlined_call_operand.vmem [shape: f32[256,128], index: 3, kind: input, shape index: {}]
  %s4 = inlined_call_operand.vmem [shape: f32[1,128], index: 4, kind: input, shape index: {}]
  %s5 = inlined_call_operand.vmem [shape: f32[16,128], index: 5, kind: output, shape index: {}]
  %s6 = sld [smem:[#allocation0]]
  $region38: #{_lambda_.24} parent=0
    _
  %s8 = ssub.s32 1, %s6
  %s9 = scalar_select 0, %s8, %s6
  // Predicated region
  $region2: #{_lambda_.24} parent=0 // pred_check
    _
  $region3: #{_lambda_.24} parent=0 // pred_check_branch
    %11 = sbr.rel (0) target = $region5
  $region4: #{_lambda_.24} parent=0 // pred_region
    _
  $region5: #{_lambda_.24} parent=0 // pred_fallthru
    _
  // Predicated region
  $region6: #{_lambda_.24} parent=0 // pred_check
    _
  $region7: #{_lambda_.24} parent=0 // pred_check_branch
    %13 = sbr.rel (0) target = $region9
  $region8: #{_lambda_.24} parent=0 // pred_region
    _
  $region9: #{_lambda_.24} parent=0 // pred_fallthru
    _
  // Predicated region
  $region10: #{_lambda_.24} parent=0 // pred_check
    _
  $region11: #{_lambda_.24} parent=0 // pred_check_branch
    %15 = sbr.rel (0) target = $region13
  $region12: #{_lambda_.24} parent=0 // pred_region
    _
  $region13: #{_lambda_.24} parent=0 // pred_fallthru
    _
  // Predicated region
  $region14: #{_lambda_.24} parent=0 // pred_check
    _
  $region15: #{_lambda_.24} parent=0 // pred_check_branch
    %17 = sbr.rel (0) target = $region17
  $region16: #{_lambda_.24} parent=0 // pred_region
    _
  $region17: #{_lambda_.24} parent=0 // pred_fallthru
    _
  // Predicated region
  $region18: #{_lambda_.24} parent=0 // pred_check
    _
  $region19: #{_lambda_.24} parent=0 // pred_check_branch
    %19 = sbr.rel (0) target = $region21
  $region20: #{_lambda_.24} parent=0 // pred_region
    _
  $region21: #{_lambda_.24} parent=0 // pred_fallthru
    _
  %p20 = scmp.eq.s32.totalorder 0, 0
  // Predicated region
  $region22: #{_lambda_.24} parent=0 // pred_check
    %p21 = pneg %p20
  $region23: #{_lambda_.24} parent=0 // pred_check_branch
    %23 = sbr.rel (%p21) target = $region25
  $region24: #{_lambda_.24} parent=0 // pred_region
    %24 = vst [vmem:[#allocation2] sm:$0xff] 0.0
    %25 = vst [vmem:[#allocation2 + $0x8] sm:$0xff] 0.0
  $region25: #{_lambda_.24} parent=0 // pred_fallthru
    _
  %v26 = vld [vmem:[%s0] sm:$0xff]
  %v27 = vld [vmem:[%s0 + $0x8] sm:$0xff]
  %v28 = vld [vmem:[%s1] sm:$0xff]
  %v29 = vld [vmem:[%s1 + $0x8] sm:$0xff]
  %v30 = vld [vmem:[%s1 + $0x10] sm:$0xff]
  %v31 = vld [vmem:[%s1 + $0x18] sm:$0xff]
  %v32 = vld [vmem:[%s1 + $0x20] sm:$0xff]
  %v33 = vld [vmem:[%s1 + $0x28] sm:$0xff]
  %v34 = vld [vmem:[%s1 + $0x30] sm:$0xff]
  %v35 = vld [vmem:[%s1 + $0x38] sm:$0xff]
  %v36 = vld [vmem:[%s1 + $0x40] sm:$0xff]
  %v37 = vld [vmem:[%s1 + $0x48] sm:$0xff]
  %v38 = vld [vmem:[%s1 + $0x50] sm:$0xff]
  %v39 = vld [vmem:[%s1 + $0x58] sm:$0xff]
  %v40 = vld [vmem:[%s1 + $0x60] sm:$0xff]
  %v41 = vld [vmem:[%s1 + $0x68] sm:$0xff]
  %v42 = vld [vmem:[%s1 + $0x70] sm:$0xff]
  %v43 = vld [vmem:[%s1 + $0x78] sm:$0xff]
  %v44 = vld [vmem:[%s1 + $0x80] sm:$0xff]
  %v45 = vld [vmem:[%s1 + $0x88] sm:$0xff]
  %v46 = vld [vmem:[%s1 + $0x90] sm:$0xff]
  %v47 = vld [vmem:[%s1 + $0x98] sm:$0xff]
  %v48 = vld [vmem:[%s1 + $0xa0] sm:$0xff]
  %v49 = vld [vmem:[%s1 + $0xa8] sm:$0xff]
  %v50 = vld [vmem:[%s1 + $0xb0] sm:$0xff]
  %v51 = vld [vmem:[%s1 + $0xb8] sm:$0xff]
  %v52 = vld [vmem:[%s1 + $0xc0] sm:$0xff]
  %v53 = vld [vmem:[%s1 + $0xc8] sm:$0xff]
  %v54 = vld [vmem:[%s1 + $0xd0] sm:$0xff]
  %v55 = vld [vmem:[%s1 + $0xd8] sm:$0xff]
  %v56 = vld [vmem:[%s1 + $0xe0] sm:$0xff]
  %v57 = vld [vmem:[%s1 + $0xe8] sm:$0xff]
  %v58 = vld [vmem:[%s1 + $0xf0] sm:$0xff]
  %v59 = vld [vmem:[%s1 + $0xf8] sm:$0xff]
  %v60 = vld [vmem:[%s2] sm:$0x3]
  %v62 = vperm.slane %v60, 0
  %v63 = vperm.slane %v60, 1
  %66 = vmatpush.msra.mxu0 %v58
  %67 = vmatpush.msra.mxu0 %v56
  %68 = vmatpush.msra.mxu0 %v54
  %69 = vmatpush.msra.mxu0 %v52
  %70 = vmatpush.msra.mxu0 %v50
  %71 = vmatpush.msra.mxu0 %v48
  %72 = vmatpush.msra.mxu0 %v46
  %73 = vmatpush.msra.mxu0 %v44
  %74 = vmatpush.msra.mxu0 %v42
  %75 = vmatpush.msra.mxu0 %v40
  %76 = vmatpush.msra.mxu0 %v38
  %77 = vmatpush.msra.mxu0 %v36
  %78 = vmatpush.msra.mxu0 %v34
  %79 = vmatpush.msra.mxu0 %v32
  %80 = vmatpush.msra.mxu0 %v30
  %81 = vmatpush.msra.mxu0 %v28
  %82 = vmatmul.f32.gmra.mxu0 %v26
  %v83 = vpop.f32.mrf.mxu0
  %v84 = vadd.f32 %v62, %v83
  %85 = vmatmul.f32.gmra.mxu0 %v27
  %v86 = vpop.f32.mrf.mxu0
  %v87 = vadd.f32 %v62, %v86
  %88 = vdwg.mxu0
  %89 = vmatpush.msra.mxu0 %v59
  %90 = vmatpush.msra.mxu0 %v57
  %91 = vmatpush.msra.mxu0 %v55
  %92 = vmatpush.msra.mxu0 %v53
  %93 = vmatpush.msra.mxu0 %v51
  %94 = vmatpush.msra.mxu0 %v49
  %95 = vmatpush.msra.mxu0 %v47
  %96 = vmatpush.msra.mxu0 %v45
  %97 = vmatpush.msra.mxu0 %v43
  %98 = vmatpush.msra.mxu0 %v41
  %99 = vmatpush.msra.mxu0 %v39
  %100 = vmatpush.msra.mxu0 %v37
  %101 = vmatpush.msra.mxu0 %v35
  %102 = vmatpush.msra.mxu0 %v33
  %103 = vmatpush.msra.mxu0 %v31
  %104 = vmatpush.msra.mxu0 %v29
  %105 = vmatmul.f32.gmra.mxu0 %v26
  %v106 = vpop.f32.mrf.mxu0
  %v107 = vadd.f32 %v63, %v106
  %108 = vmatmul.f32.gmra.mxu0 %v27
  %v109 = vpop.f32.mrf.mxu0
  %v110 = vadd.f32 %v63, %v109
  %111 = vdwg.mxu0
  %v112 = vmax.f32 %v84, 0.0
  %v113 = vmax.f32 %v107, 0.0
  %v114 = vmax.f32 %v87, 0.0
  %v115 = vmax.f32 %v110, 0.0
  %v116 = vld [vmem:[#allocation2] sm:$0xff]
  %v117 = vld [vmem:[#allocation2 + $0x8] sm:$0xff]
  %v118 = vld [vmem:[%s3] sm:$0xff]
  %v119 = vld [vmem:[%s3 + $0x8] sm:$0xff]
  %v120 = vld [vmem:[%s3 + $0x10] sm:$0xff]
  %v121 = vld [vmem:[%s3 + $0x18] sm:$0xff]
  %v122 = vld [vmem:[%s3 + $0x20] sm:$0xff]
  %v123 = vld [vmem:[%s3 + $0x28] sm:$0xff]
  %v124 = vld [vmem:[%s3 + $0x30] sm:$0xff]
  %v125 = vld [vmem:[%s3 + $0x38] sm:$0xff]
  %v126 = vld [vmem:[%s3 + $0x40] sm:$0xff]
  %v127 = vld [vmem:[%s3 + $0x48] sm:$0xff]
  %v128 = vld [vmem:[%s3 + $0x50] sm:$0xff]
  %v129 = vld [vmem:[%s3 + $0x58] sm:$0xff]
  %v130 = vld [vmem:[%s3 + $0x60] sm:$0xff]
  %v131 = vld [vmem:[%s3 + $0x68] sm:$0xff]
  %v132 = vld [vmem:[%s3 + $0x70] sm:$0xff]
  %v133 = vld [vmem:[%s3 + $0x78] sm:$0xff]
  %v134 = vld [vmem:[%s3 + $0x80] sm:$0xff]
  %v135 = vld [vmem:[%s3 + $0x88] sm:$0xff]
  %v136 = vld [vmem:[%s3 + $0x90] sm:$0xff]
  %v137 = vld [vmem:[%s3 + $0x98] sm:$0xff]
  %v138 = vld [vmem:[%s3 + $0xa0] sm:$0xff]
  %v139 = vld [vmem:[%s3 + $0xa8] sm:$0xff]
  %v140 = vld [vmem:[%s3 + $0xb0] sm:$0xff]
  %v141 = vld [vmem:[%s3 + $0xb8] sm:$0xff]
  %v142 = vld [vmem:[%s3 + $0xc0] sm:$0xff]
  %v143 = vld [vmem:[%s3 + $0xc8] sm:$0xff]
  %v144 = vld [vmem:[%s3 + $0xd0] sm:$0xff]
  %v145 = vld [vmem:[%s3 + $0xd8] sm:$0xff]
  %v146 = vld [vmem:[%s3 + $0xe0] sm:$0xff]
  %v147 = vld [vmem:[%s3 + $0xe8] sm:$0xff]
  %v148 = vld [vmem:[%s3 + $0xf0] sm:$0xff]
  %v149 = vld [vmem:[%s3 + $0xf8] sm:$0xff]
  %150 = vmatpush.msra.mxu0 %v133
  %151 = vmatpush.msra.mxu0 %v132
  %152 = vmatpush.msra.mxu0 %v131
  %153 = vmatpush.msra.mxu0 %v130
  %154 = vmatpush.msra.mxu0 %v129
  %155 = vmatpush.msra.mxu0 %v128
  %156 = vmatpush.msra.mxu0 %v127
  %157 = vmatpush.msra.mxu0 %v126
  %158 = vmatpush.msra.mxu0 %v125
  %159 = vmatpush.msra.mxu0 %v124
  %160 = vmatpush.msra.mxu0 %v123
  %161 = vmatpush.msra.mxu0 %v122
  %162 = vmatpush.msra.mxu0 %v121
  %163 = vmatpush.msra.mxu0 %v120
  %164 = vmatpush.msra.mxu0 %v119
  %165 = vmatpush.msra.mxu0 %v118
  %166 = vmatmul.f32.gmra.mxu0 %v112
  %v167 = vpop.f32.mrf.mxu0
  %v168 = vadd.f32 0.0, %v167
  %169 = vmatmul.f32.gmra.mxu0 %v114
  %v170 = vpop.f32.mrf.mxu0
  %v171 = vadd.f32 0.0, %v170
  %172 = vdwg.mxu0
  %173 = vmatpush.msra.mxu0 %v149
  %174 = vmatpush.msra.mxu0 %v148
  %175 = vmatpush.msra.mxu0 %v147
  %176 = vmatpush.msra.mxu0 %v146
  %177 = vmatpush.msra.mxu0 %v145
  %178 = vmatpush.msra.mxu0 %v144
  %179 = vmatpush.msra.mxu0 %v143
  %180 = vmatpush.msra.mxu0 %v142
  %181 = vmatpush.msra.mxu0 %v141
  %182 = vmatpush.msra.mxu0 %v140
  %183 = vmatpush.msra.mxu0 %v139
  %184 = vmatpush.msra.mxu0 %v138
  %185 = vmatpush.msra.mxu0 %v137
  %186 = vmatpush.msra.mxu0 %v136
  %187 = vmatpush.msra.mxu0 %v135
  %188 = vmatpush.msra.mxu0 %v134
  %189 = vmatmul.f32.gmra.mxu0 %v113
  %v190 = vpop.f32.mrf.mxu0
  %v191 = vadd.f32 %v168, %v190
  %192 = vmatmul.f32.gmra.mxu0 %v115
  %v193 = vpop.f32.mrf.mxu0
  %v194 = vadd.f32 %v171, %v193
  %195 = vdwg.mxu0
  %v196 = vadd.f32 %v116, %v191
  %v197 = vadd.f32 %v117, %v194
  %198 = vst [vmem:[#allocation2] sm:$0xff] %v196
  %199 = vst [vmem:[#allocation2 + $0x8] sm:$0xff] %v197
  // Predicated region
  $region26: #{_lambda_.24} parent=0 // pred_check
    %p200 = pneg %p20
  $region27: #{_lambda_.24} parent=0 // pred_check_branch
    %202 = sbr.rel (%p200) target = $region29
  $region28: #{_lambda_.24} parent=0 // pred_region
    %v203 = vld [vmem:[#allocation2] sm:$0xff]
    %v204 = vld [vmem:[#allocation2 + $0x8] sm:$0xff]
    %v205 = vld [vmem:[%s4] sm:$0x1]
    %v207 = vperm.slane %v205, 0
    %v209 = vadd.f32 %v203, %v207
    %v210 = vadd.f32 %v204, %v207
    %211 = vst [vmem:[%s5] sm:$0xff] %v209
    %212 = vst [vmem:[%s5 + $0x8] sm:$0xff] %v210
  $region29: #{_lambda_.24} parent=0 // pred_fallthru
    _
  // Predicated region
  $region30: #{_lambda_.24} parent=0 // pred_check
    _
  $region31: #{_lambda_.24} parent=0 // pred_check_branch
    %214 = sbr.rel (0) target = $region33
  $region32: #{_lambda_.24} parent=0 // pred_region
    _
  $region33: #{_lambda_.24} parent=0 // pred_fallthru
    _
  // Predicated region
  $region34: #{_lambda_.24} parent=0 // pred_check
    _
  $region35: #{_lambda_.24} parent=0 // pred_check_branch
    %216 = sbr.rel (0) target = $region37
  $region36: #{_lambda_.24} parent=0 // pred_region
    _
  $region37: #{_lambda_.24} parent=0 // pred_fallthru
    _

// kernel: _lambda_.37
$region0: #{_lambda_.37}
  #allocation0 [shape = 'u32[]', space=smem, size = 0x4, offset = 0x4, fixed_abs, tag = 'smem constant byte address 0x4 - core index']
  #allocation1 [shape = 'u32[72,128]{1,0:T(1,128)}', space=vmem, size = 0x9000, scoped, tag = 'internal scratch']
  %s0 = inlined_call_operand.vmem [shape: f32[2,8,128], index: 0, kind: input, shape index: {}]
  %s1 = inlined_call_operand.vmem [shape: f32[2,8,128], index: 1, kind: input, shape index: {}]
  %s2 = inlined_call_operand.hbm [shape: f32[2,8,128], index: 2, kind: output, shape index: {}]
  %s3 = sld [smem:[#allocation0]]
  $region41: #{_lambda_.37} parent=0
    _
  %s5 = ssub.s32 1, %s3
  %s6 = scalar_select 0, %s5, %s3
  $region1: #{_lambda_.37} parent=0
    #allocation2 [shape = 'u8[8192]{0}', space=vmem, size = 0x2000, scoped, tag = 'output window, operand 0']
    #allocation3 [shape = 's32[2]{0}', space=sflag, size = 0x8, scoped, tag = 'scoped memory for _lambda_.37']
    %7 = vsyncpa [#allocation3], 0
    %s8 = scalar_lea.sflag [#allocation3], 1
    %9 = vsyncpa %s8, 0
    loop: start=0, step=1, limit=4
    $region2: #{_lambda_.37} parent=1 // loop_pre_header
      _
    $region3: #{_lambda_.37} parent=1 // loop_header
      %s11 = sphi 0, %s15
      %p12 = scmp.ge.s32.totalorder %s11, 4
      %s21 = sphi 0, %s23
      %s24 = sphi 0, %s21
      %s25 = sphi 0, %s24
      %s41 = sphi 0, %s25
      %s47 = sphi 0, %s49
      %s50 = sphi 0, %s47
      %s51 = sphi 0, %s50
      %s67 = sphi 0, %s51
      %s73 = sphi 0, %s75
      %s76 = sphi 0, %s73
      %s77 = sphi 0, %s76
      %s93 = sphi 0, %s77
    $region4: #{_lambda_.37} parent=1 // loop_header_branch
      %14 = sbr.rel (%p12) target = $region8
    $region5: #{_lambda_.37} parent=1 // loop_body
      %s16 = ssub.s32 %s11, 1
      %s17 = ssub.s32 %s11, 2
      %s18 = sadd.s32 %s11, 1
      %s19 = ssub.s32 %s11, %s18
      %p20 = scmp.eq.s32.totalorder %s19, 0
      %s22 = sadd.s32 %s21, 1
      %s23 = scalar_select %p20, %s21, %s22
      %p26 = pneg %p20
      %p27 = scmp.eq.s32.totalorder %s11, 1
      %p28 = por %p26, %p27
      %p29 = scmp.ne.s32.totalorder %s21, %s24
      %p30 = scmp.eq.s32.totalorder %s11, 0
      %p31 = por %p29, %p30
      %p32 = scmp.ne.s32.totalorder %s21, %s24
      %p33 = scmp.eq.s32.totalorder %s16, 1
      %p34 = por %p32, %p33
      %p35 = scmp.ne.s32.totalorder %s24, %s25
      %p36 = scmp.eq.s32.totalorder %s16, 0
      %p37 = por %p35, %p36
      %p38 = scmp.ne.s32.totalorder %s24, %s25
      %p39 = scmp.eq.s32.totalorder %s17, 1
      %p40 = por %p38, %p39
      %p42 = scmp.ne.s32.totalorder %s25, %s41
      %p43 = scmp.eq.s32.totalorder %s17, 0
      %p44 = por %p42, %p43
      %s45 = ssub.s32 %s11, %s18
      %p46 = scmp.eq.s32.totalorder %s45, 0
      %s48 = sadd.s32 %s47, 1
      %s49 = scalar_select %p46, %s47, %s48
      %p52 = pneg %p46
      %p53 = scmp.eq.s32.totalorder %s11, 1
      %p54 = por %p52, %p53
      %p55 = scmp.ne.s32.totalorder %s47, %s50
      %p56 = scmp.eq.s32.totalorder %s11, 0
      %p57 = por %p55, %p56
      %p58 = scmp.ne.s32.totalorder %s47, %s50
      %p59 = scmp.eq.s32.totalorder %s16, 1
      %p60 = por %p58, %p59
      %p61 = scmp.ne.s32.totalorder %s50, %s51
      %p62 = scmp.eq.s32.totalorder %s16, 0
      %p63 = por %p61, %p62
      %p64 = scmp.ne.s32.totalorder %s50, %s51
      %p65 = scmp.eq.s32.totalorder %s17, 1
      %p66 = por %p64, %p65
      %p68 = scmp.ne.s32.totalorder %s51, %s67
      %p69 = scmp.eq.s32.totalorder %s17, 0
      %p70 = por %p68, %p69
      %s71 = ssub.s32 %s11, %s18
      %p72 = scmp.eq.s32.totalorder %s71, 0
      %s74 = sadd.s32 %s73, 1
      %s75 = scalar_select %p72, %s73, %s74
      %p78 = pneg %p72
      %p79 = scmp.eq.s32.totalorder %s11, 1
      %p80 = por %p78, %p79
      %p81 = scmp.ne.s32.totalorder %s73, %s76
      %p82 = scmp.eq.s32.totalorder %s11, 0
      %p83 = por %p81, %p82
      %p84 = scmp.ne.s32.totalorder %s73, %s76
      %p85 = scmp.eq.s32.totalorder %s16, 1
      %p86 = por %p84, %p85
      %p87 = scmp.ne.s32.totalorder %s76, %s77
      %p88 = scmp.eq.s32.totalorder %s16, 0
      %p89 = por %p87, %p88
      %p90 = scmp.ne.s32.totalorder %s76, %s77
      %p91 = scmp.eq.s32.totalorder %s17, 1
      %p92 = por %p90, %p91
      %p94 = scmp.ne.s32.totalorder %s77, %s93
      %p95 = scmp.eq.s32.totalorder %s17, 0
      %p96 = por %p94, %p95
      %p97 = scmp.le.s32.totalorder 1, %s11
      %p98 = scmp.lt.s32.totalorder %s11, 3
      %p99 = pnand %p97, %p98
      %p100 = pneg %p99
      // Predicated region
      $region9: #{_lambda_.37} parent=5 // pred_check
        _
      $region10: #{_lambda_.37} parent=5 // pred_check_branch
        %102 = sbr.rel (%p99) target = $region12
      $region11: #{_lambda_.37} parent=5 // pred_region
        %s103 = ssub.s32 %s11, 1
      $region12: #{_lambda_.37} parent=5 // pred_fallthru
        _
      %p104 = scmp.lt.s32.totalorder %s11, 2
      // Predicated region
      $region13: #{_lambda_.37} parent=5 // pred_check
        %p105 = pneg %p104
      $region14: #{_lambda_.37} parent=5 // pred_check_branch
        %107 = sbr.rel (%p105) target = $region16
      $region15: #{_lambda_.37} parent=5 // pred_region
        // Predicated region
        $region17: #{_lambda_.37} parent=15 // pred_check
          %p108 = pneg %p31
        $region18: #{_lambda_.37} parent=15 // pred_check_branch
          %110 = sbr.rel (%p108) target = $region20
        $region19: #{_lambda_.37} parent=15 // pred_region
          %p111 = scmp.lt.s32.totalorder %s11, 1
          %s112 = scalar_select %p111, %s11, 1
          %s113 = smul.addr %s112, 8
          %s114 = scalar_lea.vmem %s0, %s113
        $region20: #{_lambda_.37} parent=15 // pred_fallthru
          _
        // Predicated region
        $region21: #{_lambda_.37} parent=15 // pred_check
          %p115 = pneg %p57
        $region22: #{_lambda_.37} parent=15 // pred_check_branch
          %117 = sbr.rel (%p115) target = $region24
        $region23: #{_lambda_.37} parent=15 // pred_region
          %p118 = scmp.lt.s32.totalorder %s11, 1
          %s119 = scalar_select %p118, %s11, 1
          %s120 = smul.addr %s119, 8
          %s121 = scalar_lea.vmem %s1, %s120
        $region24: #{_lambda_.37} parent=15 // pred_fallthru
          _
      $region16: #{_lambda_.37} parent=5 // pred_fallthru
        _
      %p122 = scmp.le.s32.totalorder 1, %s11
      %p123 = scmp.lt.s32.totalorder %s11, 3
      %p124 = pnand %p122, %p123
      %p125 = pneg %p124
      // Predicated region
      $region25: #{_lambda_.37} parent=5 // pred_check
        _
      $region26: #{_lambda_.37} parent=5 // pred_check_branch
        %127 = sbr.rel (%p124) target = $region28
      $region27: #{_lambda_.37} parent=5 // pred_region
        %s128 = ssub.s32 %s11, 1
        %p129 = scmp.lt.s32.totalorder %s16, 1
        %s130 = scalar_select %p129, %s16, 1
        %s131 = smul.addr %s130, 8
        %s132 = scalar_lea.vmem %s0, %s131
        %p133 = pneg %p37
        %p134 = pneg %p34
        %p135 = scmp.lt.s32.totalorder %s16, 1
        %s136 = scalar_select %p135, %s16, 1
        %s137 = smul.addr %s136, 8
        %s138 = scalar_lea.vmem %s1, %s137
        %p139 = pneg %p63
        %p140 = pneg %p60
        %p141 = pneg %p89
        %p142 = pneg %p86
        %s143 = sand.u32 %s76, 1
        %s144 = scalar_lea.sflag [#allocation3], %s143
        %s145 = sand.u32 %s76, 1
        %s146 = smul.addr %s145, 8
        %s147 = scalar_lea.vmem [#allocation2], %s146
        %p148 = scmp.lt.s32.totalorder %s16, 1
        %s149 = scalar_select %p148, %s16, 1
        %s150 = smul.addr %s149, 8
        %s151 = scalar_lea.vmem %s0, %s150
        %p152 = scmp.lt.s32.totalorder %s16, 1
        %s153 = scalar_select %p152, %s16, 1
        %s154 = smul.addr %s153, 8
        %s155 = scalar_lea.vmem %s1, %s154
        %v156 = vld [vmem:[%s151] sm:$0xff]
        %v157 = vld [vmem:[%s155] sm:$0xff]
        %v158 = vadd.f32 %v156, %v157
        %159 = vadd.xlane.f32.xlu0 %v158
        %v160 = vpop.xlane.xlu0 %159
        %v161 = vrot.slane %v160, 4
        %v162 = vadd.f32 %v160, %v161
        %v163 = vrot.slane %v162, 2
        %v164 = vadd.f32 %v162, %v163
        %v165 = vrot.slane %v164, 1
        %v166 = vadd.f32 %v164, %v165
        %s167 = vtos %v166
        %v168 = vstv %s167
        %v169 = vrcp.pop 1024.0
        %v170 = vmul.f32 1024.0, %v169
        %v171 = vsub.f32 1.0, %v170
        %v172 = vmul.f32 %v169, %v171
        %v173 = vadd.f32 %v169, %v172
        %vm174 = vweird.f32 %v169
        %v175 = vsel %vm174, %v169, %v173
        %v176 = vmul.f32 %v168, %v175
        %v177 = vsub.f32 %v158, %v176
        %v178 = vmul.f32 %v177, %v177
        %179 = vadd.xlane.f32.xlu0 %v178
        %v180 = vpop.xlane.xlu0 %179
        %v181 = vrot.slane %v180, 4
        %v182 = vadd.f32 %v180, %v181
        %v183 = vrot.slane %v182, 2
        %v184 = vadd.f32 %v182, %v183
        %v185 = vrot.slane %v184, 1
        %v186 = vadd.f32 %v184, %v185
        %s187 = vtos %v186
        %v188 = vstv %s187
        %v189 = vmul.f32 %v188, %v175
        %v190 = vadd.f32 %v189, 1e-05
        %v191 = vrsqrt.pop %v190
        %v192 = vmul.f32 %v191, %v190
        %v193 = vmul.f32 %v192, %v191
        %v194 = vmul.f32 0.5, %v193
        %v195 = vsub.f32 1.5, %v194
        %v196 = vmul.f32 %v191, %v195
        %vm197 = vweird.f32 %v190
        %vm198 = vweird.f32 %v191
        %vm199 = vmor %vm197, %vm198
        %v200 = vsel %vm199, %v191, %v196
        %v201 = vmul.f32 %v177, %v200
        %202 = vst [vmem:[%s147] sm:$0xff] %v201
        %s203 = sand.u32 %s76, 1
        %s204 = scalar_lea.sflag [#allocation3], %s203
        %s205 = sand.u32 %s76, 1
        %s206 = smul.addr %s205, 8
        %s207 = scalar_lea.vmem [#allocation2], %s206
        // Predicated region
        $region29: #{_lambda_.37} parent=27 // pred_check
          %p208 = pneg %p86
        $region30: #{_lambda_.37} parent=27 // pred_check_branch
          %210 = sbr.rel (%p208) target = $region32
        $region31: #{_lambda_.37} parent=27 // pred_region
          %212 = vsyncadd %s204, 0
          %s213 = smul.addr %s16, 8
          %s214 = scalar_lea.hbm %s2, %s213
          %s216 = sshll.u32 %s207, 4
          %s217 = int_to_ptr.vmem [resolvable:$true] %s216
          %s218 = sshll.u32 %s214, 4
          %s219 = int_to_ptr.hbm [resolvable:$true] %s218
          %221 = dma.vmem_to_hbm [thread:$0]  %s217, 128, %s219, %s204
        $region32: #{_lambda_.37} parent=27 // pred_fallthru
          _
      $region28: #{_lambda_.37} parent=5 // pred_fallthru
        _
      %p222 = scmp.le.s32.totalorder 2, %s11
      // Predicated region
      $region33: #{_lambda_.37} parent=5 // pred_check
        %p223 = pneg %p222
      $region34: #{_lambda_.37} parent=5 // pred_check_branch
        %225 = sbr.rel (%p223) target = $region36
      $region35: #{_lambda_.37} parent=5 // pred_region
        %s226 = ssub.s32 %s11, 2
        // Predicated region
        $region37: #{_lambda_.37} parent=35 // pred_check
          %p227 = pneg %p92
        $region38: #{_lambda_.37} parent=35 // pred_check_branch
          %229 = sbr.rel (%p227) target = $region40
        $region39: #{_lambda_.37} parent=35 // pred_region
          %s230 = sand.u32 %s77, 1
          %s231 = scalar_lea.sflag [#allocation3], %s230
          %s232 = sand.u32 %s77, 1
          %s233 = smul.addr %s232, 8
          %s234 = scalar_lea.vmem [#allocation2], %s233
          %236 = dma.done %s231, 128
        $region40: #{_lambda_.37} parent=35 // pred_fallthru
          _
      $region36: #{_lambda_.37} parent=5 // pred_fallthru
        _
    $region6: #{_lambda_.37} parent=1 // loop_footer
      %s15 = sadd.s32 1, %s11
    $region7: #{_lambda_.37} parent=1 // loop_footer_branch
      %10 = sbr.rel target = $region3
    $region8: #{_lambda_.37} parent=1 // loop_exit
      _
    %237 = vsyncpa [#allocation3], 1
    %s238 = scalar_lea.sflag [#allocation3], 1
    %239 = vsyncpa %s238, 1

</llo_original>
